<compile_context>
chip_gen: v7x
topology: tpu7x:2x2x1
jax: 0.10.0
libtpu: 0.0.40
codegen_flags: <defaults>
</compile_context>

<pallas_src>
import functools

import jax
import jax.numpy as jnp
from jax.experimental import pallas as pl
from jax.experimental.pallas import tpu as pltpu

NUM_CLASSES = 5
LANE = 128
SUBLANE = 8


def _round_up(x, m):
    return (x + m - 1) // m * m


def lstm_var_input_kernel(x_ref, s_ref, wih_ref, whh_ref, b_ref,
                          wlin_ref, blin_ref, out_ref,
                          h_scr, c_scr, gx_scr, *, t_blk, b_pad, h_pad):
    tb = pl.program_id(0)

    @pl.when(tb == 0)
    def _init():
        h_scr[...] = jnp.zeros_like(h_scr)
        c_scr[...] = jnp.zeros_like(c_scr)

    # ---- Phase 1: hoisted input projection for the whole time block ----------
    # One batched MXU matmul (M = t_blk * b_pad); bias folded in here so the
    # serial recurrence below only does h @ W_hh.
    gx_scr[...] = (jnp.dot(x_ref[...], wih_ref[...],
                           preferred_element_type=jnp.float32)
                   + b_ref[...])                              # (t_blk*b_pad, 4*h_pad)

    # ---- Phase 2: serial recurrence over the time block ----------------------
    lengths = s_ref[...]                                      # (b_pad, 1) int32
    t0 = tb * t_blk

    def step(i, carry):
        h, c = carry
        row = pl.multiple_of(i * b_pad, b_pad)                # sublane-aligned slice
        gx_t = gx_scr[pl.ds(row, b_pad), :]                   # (b_pad, 4*h_pad)
        gates = gx_t + jnp.dot(h.astype(jnp.bfloat16), whh_ref[...],
                               preferred_element_type=jnp.float32)
        # gate-major, 128-lane-aligned slices (PyTorch order: i, f, g, o)
        i_g = jax.nn.sigmoid(gates[:, 0 * h_pad:1 * h_pad])
        f_g = jax.nn.sigmoid(gates[:, 1 * h_pad:2 * h_pad])
        g_g = jnp.tanh(gates[:, 2 * h_pad:3 * h_pad])
        o_g = jax.nn.sigmoid(gates[:, 3 * h_pad:4 * h_pad])
        c_new = f_g * c + i_g * g_g
        h_new = o_g * jnp.tanh(c_new)
        # pack_padded_sequence semantics: freeze state once t >= length[b]
        valid = (t0 + i) < lengths                            # (b_pad, 1) bool
        h = jnp.where(valid, h_new, h)
        c = jnp.where(valid, c_new, c)
        return h, c

    h, c = jax.lax.fori_loop(0, t_blk, step, (h_scr[...], c_scr[...]),
                             unroll=True)
    h_scr[...] = h
    c_scr[...] = c

    # ---- Phase 3: classifier head on the frozen last hidden state ------------
    @pl.when(tb == pl.num_programs(0) - 1)
    def _final():
        out_ref[...] = (jnp.dot(h_scr[...], wlin_ref[...],
                                preferred_element_type=jnp.float32)
                        + blin_ref[...])


def lstm_variable_input_forward(tokens, lengths, params):
    """tokens: (B, T) int32, lengths: (B,) int32. Returns (B, 5) float32."""
    emb = params["emb"]            # (V, E), row 0 zero (padding_idx=0)
    w_ih = params["w_ih"]          # (4H, E)   PyTorch layout
    w_hh = params["w_hh"]          # (4H, H)
    b_sum = params["b_ih"] + params["b_hh"]   # (4H,)
    w_lin = params["w_lin"]        # (5, H)
    b_lin = params["b_lin"]        # (5,)

    B, T = tokens.shape
    E = emb.shape[1]
    H = w_hh.shape[1]

    b_pad = _round_up(max(B, SUBLANE), SUBLANE)     # batch -> sublane multiple
    h_pad = _round_up(H, LANE)                      # each gate -> full lane block
    out_pad = _round_up(NUM_CLASSES, LANE)          # lane-dense output head
    t_blk = T if T <= 32 else 32
    t_pad = _round_up(T, t_blk)
    n_blocks = t_pad // t_blk

    # --- weight padding: gate-major (4, h_pad) column blocks; zero padding is
    #     exact (see header comment). Pre-transposed so gates = x @ W + h @ W + b.
    def pad_gates_T(w):                             # (4H, D) -> (D, 4*h_pad)
        D = w.shape[1]
        out = jnp.zeros((D, 4 * h_pad), jnp.float32)
        for g in range(4):
            out = out.at[:, g * h_pad:g * h_pad + H].set(w[g * H:(g + 1) * H, :].T)
        return out

    wih_t = pad_gates_T(w_ih)                                       # (E, 4*h_pad)
    whh_t = jnp.zeros((h_pad, 4 * h_pad), jnp.float32)
    whh_t = whh_t.at[:H, :].set(pad_gates_T(w_hh))                  # (h_pad, 4*h_pad)
    bias = jnp.zeros((1, 4 * h_pad), jnp.float32)
    for g in range(4):
        bias = bias.at[0, g * h_pad:g * h_pad + H].set(b_sum[g * H:(g + 1) * H])
    wlin_t = jnp.zeros((h_pad, out_pad), jnp.float32)
    wlin_t = wlin_t.at[:H, :NUM_CLASSES].set(w_lin.T)               # (h_pad, out_pad)
    blin = jnp.zeros((1, out_pad), jnp.float32).at[0, :NUM_CLASSES].set(b_lin)

    # --- inputs: pad batch (length 0 for pad rows) and time (token 0 -> masked),
    #     gather embeddings directly in time-major order, flatten to 2D so the
    #     kernel never reshapes, cast activations to bf16 for the MXU.
    tok_p = jnp.zeros((b_pad, t_pad), tokens.dtype).at[:B, :T].set(tokens)
    len_p = jnp.zeros((b_pad, 1), jnp.int32).at[:B, 0].set(lengths.astype(jnp.int32))
    x_tbe = emb[tok_p.T]                                            # (t_pad, b_pad, E)
    x2d = x_tbe.reshape(t_pad * b_pad, E).astype(jnp.bfloat16)

    kernel = functools.partial(lstm_var_input_kernel,
                               t_blk=t_blk, b_pad=b_pad, h_pad=h_pad)

    out = pl.pallas_call(
        kernel,
        out_shape=jax.ShapeDtypeStruct((b_pad, out_pad), jnp.float32),
        grid_spec=pltpu.PrefetchScalarGridSpec(
            num_scalar_prefetch=0,
            grid=(n_blocks,),
            in_specs=[
                pl.BlockSpec((t_blk * b_pad, E), lambda tb: (tb, 0)),   # x (time-block major)
                pl.BlockSpec((b_pad, 1), lambda tb: (0, 0)),            # lengths
                pl.BlockSpec((E, 4 * h_pad), lambda tb: (0, 0)),        # W_ih^T (bf16)
                pl.BlockSpec((h_pad, 4 * h_pad), lambda tb: (0, 0)),    # W_hh^T (bf16)
                pl.BlockSpec((1, 4 * h_pad), lambda tb: (0, 0)),        # b_ih + b_hh
                pl.BlockSpec((h_pad, out_pad), lambda tb: (0, 0)),      # W_lin^T
                pl.BlockSpec((1, out_pad), lambda tb: (0, 0)),          # b_lin
            ],
            out_specs=pl.BlockSpec((b_pad, out_pad), lambda tb: (0, 0)),
            scratch_shapes=[
                pltpu.VMEM((b_pad, h_pad), jnp.float32),                # h
                pltpu.VMEM((b_pad, h_pad), jnp.float32),                # c
                pltpu.VMEM((t_blk * b_pad, 4 * h_pad), jnp.float32),    # gates_x block
            ],
        ),
        compiler_params=pltpu.CompilerParams(
            dimension_semantics=("arbitrary",)),    # time recurrence is sequential
    )(x2d, len_p, wih_t.astype(jnp.bfloat16), whh_t.astype(jnp.bfloat16),
      bias, wlin_t, blin)
    return out[:B, :NUM_CLASSES]


def reference_forward(tokens, lengths, params):
    """Pure-JAX reference with the same bf16-dot numerics, for validation."""
    emb = params["emb"]
    w_ih, w_hh = params["w_ih"], params["w_hh"]
    b = (params["b_ih"] + params["b_hh"]).reshape(1, -1)
    w_lin, b_lin = params["w_lin"], params["b_lin"]

    B, T = tokens.shape
    H = w_hh.shape[1]
    x = emb[tokens].astype(jnp.bfloat16)                 # (B, T, E)
    wih_t = w_ih.T.astype(jnp.bfloat16)
    whh_t = w_hh.T.astype(jnp.bfloat16)
    gx = jnp.einsum("bte,eg->btg", x, wih_t,
                    preferred_element_type=jnp.float32) + b

    h = jnp.zeros((B, H), jnp.float32)
    c = jnp.zeros((B, H), jnp.float32)

    def step(carry, t):
        h, c = carry
        gates = gx[:, t, :] + jnp.dot(h.astype(jnp.bfloat16), whh_t,
                                      preferred_element_type=jnp.float32)
        i_g = jax.nn.sigmoid(gates[:, 0 * H:1 * H])
        f_g = jax.nn.sigmoid(gates[:, 1 * H:2 * H])
        g_g = jnp.tanh(gates[:, 2 * H:3 * H])
        o_g = jax.nn.sigmoid(gates[:, 3 * H:4 * H])
        c_new = f_g * c + i_g * g_g
        h_new = o_g * jnp.tanh(c_new)
        valid = (t < lengths).reshape(B, 1)
        return (jnp.where(valid, h_new, h), jnp.where(valid, c_new, c)), None

    (h, c), _ = jax.lax.scan(step, (h, c), jnp.arange(T))
    return h @ w_lin.T + b_lin


def init_params(key, vocab_size, embedding_dim, hidden_dim):
    k = jax.random.split(key, 7)
    bound = 1.0 / jnp.sqrt(hidden_dim)
    emb = jax.random.normal(k[0], (vocab_size, embedding_dim), jnp.float32)
    emb = emb.at[0].set(0.0)  # padding_idx=0
    w_ih = jax.random.uniform(k[1], (4 * hidden_dim, embedding_dim),
                              jnp.float32, -bound, bound)
    w_hh = jax.random.uniform(k[2], (4 * hidden_dim, hidden_dim),
                              jnp.float32, -bound, bound)
    b_ih = jax.random.uniform(k[3], (4 * hidden_dim,), jnp.float32, -bound, bound)
    b_hh = jax.random.uniform(k[4], (4 * hidden_dim,), jnp.float32, -bound, bound)
    w_lin = jax.random.uniform(k[5], (NUM_CLASSES, hidden_dim),
                               jnp.float32, -bound, bound)
    b_lin = jax.random.uniform(k[6], (NUM_CLASSES,), jnp.float32, -bound, bound)
    return {"emb": emb, "w_ih": w_ih, "w_hh": w_hh,
            "b_ih": b_ih, "b_hh": b_hh, "w_lin": w_lin, "b_lin": b_lin}


if __name__ == "__main__":
    vocab_size = 2          # words = ['', 'UNK']
    embedding_dim = 16
    hidden_dim = 32
    B, T = 2, 8

    key = jax.random.PRNGKey(0)
    pkey, tkey = jax.random.split(key)
    params = init_params(pkey, vocab_size, embedding_dim, hidden_dim)

    tokens = jax.random.randint(tkey, (B, T), 0, vocab_size, dtype=jnp.int32)
    lengths = jnp.array([5, 8], dtype=jnp.int32)   # variable sequence lengths

    out = jax.block_until_ready(lstm_variable_input_forward(tokens, lengths, params))
    ref = jax.block_until_ready(reference_forward(tokens, lengths, params))

    assert out.shape == (B, NUM_CLASSES)
    assert jnp.allclose(out, ref, atol=2e-3, rtol=2e-3), (out, ref)

    print("KERNEL_OK")
</pallas_src>

<mosaic_0001>
module attributes {stable_mosaic.version = 11 : i64} {
  func.func @lstm_var_input_kernel(%arg0: i32, %arg1: memref<64x16xbf16, #tpu.memory_space<vmem>>, %arg2: memref<8x1xi32, #tpu.memory_space<vmem>>, %arg3: memref<16x512xbf16, #tpu.memory_space<vmem>>, %arg4: memref<128x512xbf16, #tpu.memory_space<vmem>>, %arg5: memref<1x512xf32, #tpu.memory_space<vmem>>, %arg6: memref<128x128xf32, #tpu.memory_space<vmem>>, %arg7: memref<1x128xf32, #tpu.memory_space<vmem>>, %arg8: memref<8x128xf32, #tpu.memory_space<vmem>>, %arg9: memref<8x128xf32, #tpu.memory_space<vmem>>, %arg10: memref<8x128xf32, #tpu.memory_space<vmem>>, %arg11: memref<64x512xf32, #tpu.memory_space<vmem>>) attributes {dimension_semantics = [#tpu.dimension_semantics<arbitrary>], iteration_bounds = array<i64: 1>, scalar_prefetch = 0 : i64, scratch_operands = 3 : i64, tpu.core_type = #tpu.core_type<tc>, window_params = [{transform_indices = @transform_0, window_bounds = array<i64: 64, 16>}, {pipeline_mode = #tpu.pipeline_mode<synchronous>, transform_indices = @transform_1, window_bounds = array<i64: 8, 1>}, {pipeline_mode = #tpu.pipeline_mode<synchronous>, transform_indices = @transform_2, window_bounds = array<i64: 16, 512>}, {pipeline_mode = #tpu.pipeline_mode<synchronous>, transform_indices = @transform_3, window_bounds = array<i64: 128, 512>}, {pipeline_mode = #tpu.pipeline_mode<synchronous>, transform_indices = @transform_4, window_bounds = array<i64: 1, 512>}, {pipeline_mode = #tpu.pipeline_mode<synchronous>, transform_indices = @transform_5, window_bounds = array<i64: 128, 128>}, {pipeline_mode = #tpu.pipeline_mode<synchronous>, transform_indices = @transform_6, window_bounds = array<i64: 1, 128>}, {pipeline_mode = #tpu.pipeline_mode<synchronous>, transform_indices = @transform_7, window_bounds = array<i64: 8, 128>}]} {
    %c0_i32 = arith.constant 0 : i32
    %0 = arith.cmpi eq, %arg0, %c0_i32 : i32
    %1 = arith.extui %0 : i1 to i32
    %c0_i32_0 = arith.constant 0 : i32
    %2 = arith.cmpi ne, %1, %c0_i32_0 : i32
    scf.if %2 {
      %cst_86 = arith.constant 0.000000e+00 : f32
      %355 = vector.broadcast %cst_86 : f32 to vector<8x128xf32>
      %c0_87 = arith.constant 0 : index
      %c0_88 = arith.constant 0 : index
      %356 = vector.load %arg9[%c0_87, %c0_88] : memref<8x128xf32, #tpu.memory_space<vmem>>, vector<8x128xf32>
      tpu.vector_store %arg9[%c0_87, %c0_88], %355 {strides = array<i32>} : memref<8x128xf32, #tpu.memory_space<vmem>>, vector<8x128xf32>,
      %cst_89 = arith.constant 0.000000e+00 : f32
      %357 = vector.broadcast %cst_89 : f32 to vector<8x128xf32>
      %c0_90 = arith.constant 0 : index
      %c0_91 = arith.constant 0 : index
      %358 = vector.load %arg10[%c0_90, %c0_91] : memref<8x128xf32, #tpu.memory_space<vmem>>, vector<8x128xf32>
      tpu.vector_store %arg10[%c0_90, %c0_91], %357 {strides = array<i32>} : memref<8x128xf32, #tpu.memory_space<vmem>>, vector<8x128xf32>,
    } else {
    }
    %c0 = arith.constant 0 : index
    %c0_1 = arith.constant 0 : index
    %3 = vector.load %arg1[%c0, %c0_1] : memref<64x16xbf16, #tpu.memory_space<vmem>>, vector<64x16xbf16>
    %c0_2 = arith.constant 0 : index
    %c0_3 = arith.constant 0 : index
    %4 = vector.load %arg3[%c0_2, %c0_3] : memref<16x512xbf16, #tpu.memory_space<vmem>>, vector<16x512xbf16>
    %cst = arith.constant dense<0.000000e+00> : vector<64x512xf32>
    %5 = tpu.matmul %3, %4, %cst {dimension_numbers = #tpu.dot_dimension_numbers<[1], [0], [0], [1], [0, 0, 1, 1], [], []>} : vector<64x16xbf16>, vector<16x512xbf16>, vector<64x512xf32> -> vector<64x512xf32>
    %c0_4 = arith.constant 0 : index
    %c0_5 = arith.constant 0 : index
    %6 = vector.load %arg5[%c0_4, %c0_5] : memref<1x512xf32, #tpu.memory_space<vmem>>, vector<1x512xf32>
    %7 = vector.broadcast %6 : vector<1x512xf32> to vector<64x512xf32>
    %8 = arith.addf %5, %7 : vector<64x512xf32>
    %c0_6 = arith.constant 0 : index
    %c0_7 = arith.constant 0 : index
    %9 = vector.load %arg11[%c0_6, %c0_7] : memref<64x512xf32, #tpu.memory_space<vmem>>, vector<64x512xf32>
    tpu.vector_store %arg11[%c0_6, %c0_7], %8 {strides = array<i32>} : memref<64x512xf32, #tpu.memory_space<vmem>>, vector<64x512xf32>,
    %c0_8 = arith.constant 0 : index
    %c0_9 = arith.constant 0 : index
    %10 = vector.load %arg2[%c0_8, %c0_9] : memref<8x1xi32, #tpu.memory_space<vmem>>, vector<8x1xi32>
    %c8_i32 = arith.constant 8 : i32
    %11 = arith.muli %arg0, %c8_i32 : i32
    %c0_10 = arith.constant 0 : index
    %c0_11 = arith.constant 0 : index
    %12 = vector.load %arg9[%c0_10, %c0_11] : memref<8x128xf32, #tpu.memory_space<vmem>>, vector<8x128xf32>
    %c0_12 = arith.constant 0 : index
    %c0_13 = arith.constant 0 : index
    %13 = vector.load %arg10[%c0_12, %c0_13] : memref<8x128xf32, #tpu.memory_space<vmem>>, vector<8x128xf32>
    %c0_i32_14 = arith.constant 0 : i32
    %c8_i32_15 = arith.constant 8 : i32
    %14 = arith.muli %c0_i32_14, %c8_i32_15 : i32
    %15 = tpu.assume_multiple %14, 8 : i32
    %16 = arith.index_cast %15 : i32 to index
    %c0_16 = arith.constant 0 : index
    %17 = vector.load %arg11[%16, %c0_16] : memref<64x512xf32, #tpu.memory_space<vmem>>, vector<8x512xf32>
    %18 = arith.truncf %12 : vector<8x128xf32> to vector<8x128xbf16>
    %c0_17 = arith.constant 0 : index
    %c0_18 = arith.constant 0 : index
    %19 = vector.load %arg4[%c0_17, %c0_18] : memref<128x512xbf16, #tpu.memory_space<vmem>>, vector<128x512xbf16>
    %cst_19 = arith.constant dense<0.000000e+00> : vector<8x512xf32>
    %20 = tpu.matmul %18, %19, %cst_19 {dimension_numbers = #tpu.dot_dimension_numbers<[1], [0], [0], [1], [0, 0, 1, 1], [], []>} : vector<8x128xbf16>, vector<128x512xbf16>, vector<8x512xf32> -> vector<8x512xf32>
    %21 = arith.addf %17, %20 : vector<8x512xf32>
    %22 = vector.extract_strided_slice %21 {offsets = [0, 0], sizes = [8, 128], strides = [1, 1]} : vector<8x512xf32> to vector<8x128xf32>
    %23 = arith.negf %22 : vector<8x128xf32>
    %24 = math.exp %23 : vector<8x128xf32>
    %cst_20 = arith.constant 1.000000e+00 : f32
    %25 = vector.broadcast %cst_20 : f32 to vector<8x128xf32>
    %26 = arith.addf %25, %24 : vector<8x128xf32>
    %27 = arith.divf %25, %26 : vector<8x128xf32>
    %28 = vector.extract_strided_slice %21 {offsets = [0, 128], sizes = [8, 128], strides = [1, 1]} : vector<8x512xf32> to vector<8x128xf32>
    %29 = arith.negf %28 : vector<8x128xf32>
    %30 = math.exp %29 : vector<8x128xf32>
    %cst_21 = arith.constant 1.000000e+00 : f32
    %31 = vector.broadcast %cst_21 : f32 to vector<8x128xf32>
    %32 = arith.addf %31, %30 : vector<8x128xf32>
    %33 = arith.divf %31, %32 : vector<8x128xf32>
    %34 = vector.extract_strided_slice %21 {offsets = [0, 256], sizes = [8, 128], strides = [1, 1]} : vector<8x512xf32> to vector<8x128xf32>
    %35 = math.tanh %34 : vector<8x128xf32>
    %36 = vector.extract_strided_slice %21 {offsets = [0, 384], sizes = [8, 128], strides = [1, 1]} : vector<8x512xf32> to vector<8x128xf32>
    %37 = arith.negf %36 : vector<8x128xf32>
    %38 = math.exp %37 : vector<8x128xf32>
    %cst_22 = arith.constant 1.000000e+00 : f32
    %39 = vector.broadcast %cst_22 : f32 to vector<8x128xf32>
    %40 = arith.addf %39, %38 : vector<8x128xf32>
    %41 = arith.divf %39, %40 : vector<8x128xf32>
    %42 = arith.mulf %33, %13 : vector<8x128xf32>
    %43 = arith.mulf %27, %35 : vector<8x128xf32>
    %44 = arith.addf %42, %43 : vector<8x128xf32>
    %45 = math.tanh %44 : vector<8x128xf32>
    %46 = arith.mulf %41, %45 : vector<8x128xf32>
    %47 = arith.addi %11, %c0_i32_14 : i32
    %48 = vector.broadcast %47 : i32 to vector<8x1xi32>
    %49 = arith.cmpi slt, %48, %10 : vector<8x1xi32>
    %50 = vector.shape_cast %49 : vector<8x1xi1> to vector<8x1xi1>
    %51 = vector.broadcast %50 : vector<8x1xi1> to vector<8x128xi1>
    %52 = arith.select %51, %46, %12 : vector<8x128xi1>, vector<8x128xf32>
    %53 = vector.shape_cast %49 : vector<8x1xi1> to vector<8x1xi1>
    %54 = vector.broadcast %53 : vector<8x1xi1> to vector<8x128xi1>
    %55 = arith.select %54, %44, %13 : vector<8x128xi1>, vector<8x128xf32>
    %c1_i32 = arith.constant 1 : i32
    %c8_i32_23 = arith.constant 8 : i32
    %56 = arith.muli %c1_i32, %c8_i32_23 : i32
    %57 = tpu.assume_multiple %56, 8 : i32
    %58 = arith.index_cast %57 : i32 to index
    %c0_24 = arith.constant 0 : index
    %59 = vector.load %arg11[%58, %c0_24] : memref<64x512xf32, #tpu.memory_space<vmem>>, vector<8x512xf32>
    %60 = arith.truncf %52 : vector<8x128xf32> to vector<8x128xbf16>
    %c0_25 = arith.constant 0 : index
    %c0_26 = arith.constant 0 : index
    %61 = vector.load %arg4[%c0_25, %c0_26] : memref<128x512xbf16, #tpu.memory_space<vmem>>, vector<128x512xbf16>
    %cst_27 = arith.constant dense<0.000000e+00> : vector<8x512xf32>
    %62 = tpu.matmul %60, %61, %cst_27 {dimension_numbers = #tpu.dot_dimension_numbers<[1], [0], [0], [1], [0, 0, 1, 1], [], []>} : vector<8x128xbf16>, vector<128x512xbf16>, vector<8x512xf32> -> vector<8x512xf32>
    %63 = arith.addf %59, %62 : vector<8x512xf32>
    %64 = vector.extract_strided_slice %63 {offsets = [0, 0], sizes = [8, 128], strides = [1, 1]} : vector<8x512xf32> to vector<8x128xf32>
    %65 = arith.negf %64 : vector<8x128xf32>
    %66 = math.exp %65 : vector<8x128xf32>
    %cst_28 = arith.constant 1.000000e+00 : f32
    %67 = vector.broadcast %cst_28 : f32 to vector<8x128xf32>
    %68 = arith.addf %67, %66 : vector<8x128xf32>
    %69 = arith.divf %67, %68 : vector<8x128xf32>
    %70 = vector.extract_strided_slice %63 {offsets = [0, 128], sizes = [8, 128], strides = [1, 1]} : vector<8x512xf32> to vector<8x128xf32>
    %71 = arith.negf %70 : vector<8x128xf32>
    %72 = math.exp %71 : vector<8x128xf32>
    %cst_29 = arith.constant 1.000000e+00 : f32
    %73 = vector.broadcast %cst_29 : f32 to vector<8x128xf32>
    %74 = arith.addf %73, %72 : vector<8x128xf32>
    %75 = arith.divf %73, %74 : vector<8x128xf32>
    %76 = vector.extract_strided_slice %63 {offsets = [0, 256], sizes = [8, 128], strides = [1, 1]} : vector<8x512xf32> to vector<8x128xf32>
    %77 = math.tanh %76 : vector<8x128xf32>
    %78 = vector.extract_strided_slice %63 {offsets = [0, 384], sizes = [8, 128], strides = [1, 1]} : vector<8x512xf32> to vector<8x128xf32>
    %79 = arith.negf %78 : vector<8x128xf32>
    %80 = math.exp %79 : vector<8x128xf32>
    %cst_30 = arith.constant 1.000000e+00 : f32
    %81 = vector.broadcast %cst_30 : f32 to vector<8x128xf32>
    %82 = arith.addf %81, %80 : vector<8x128xf32>
    %83 = arith.divf %81, %82 : vector<8x128xf32>
    %84 = arith.mulf %75, %55 : vector<8x128xf32>
    %85 = arith.mulf %69, %77 : vector<8x128xf32>
    %86 = arith.addf %84, %85 : vector<8x128xf32>
    %87 = math.tanh %86 : vector<8x128xf32>
    %88 = arith.mulf %83, %87 : vector<8x128xf32>
    %89 = arith.addi %11, %c1_i32 : i32
    %90 = vector.broadcast %89 : i32 to vector<8x1xi32>
    %91 = arith.cmpi slt, %90, %10 : vector<8x1xi32>
    %92 = vector.shape_cast %91 : vector<8x1xi1> to vector<8x1xi1>
    %93 = vector.broadcast %92 : vector<8x1xi1> to vector<8x128xi1>
    %94 = arith.select %93, %88, %52 : vector<8x128xi1>, vector<8x128xf32>
    %95 = vector.shape_cast %91 : vector<8x1xi1> to vector<8x1xi1>
    %96 = vector.broadcast %95 : vector<8x1xi1> to vector<8x128xi1>
    %97 = arith.select %96, %86, %55 : vector<8x128xi1>, vector<8x128xf32>
    %c2_i32 = arith.constant 2 : i32
    %c8_i32_31 = arith.constant 8 : i32
    %98 = arith.muli %c2_i32, %c8_i32_31 : i32
    %99 = tpu.assume_multiple %98, 8 : i32
    %100 = arith.index_cast %99 : i32 to index
    %c0_32 = arith.constant 0 : index
    %101 = vector.load %arg11[%100, %c0_32] : memref<64x512xf32, #tpu.memory_space<vmem>>, vector<8x512xf32>
    %102 = arith.truncf %94 : vector<8x128xf32> to vector<8x128xbf16>
    %c0_33 = arith.constant 0 : index
    %c0_34 = arith.constant 0 : index
    %103 = vector.load %arg4[%c0_33, %c0_34] : memref<128x512xbf16, #tpu.memory_space<vmem>>, vector<128x512xbf16>
    %cst_35 = arith.constant dense<0.000000e+00> : vector<8x512xf32>
    %104 = tpu.matmul %102, %103, %cst_35 {dimension_numbers = #tpu.dot_dimension_numbers<[1], [0], [0], [1], [0, 0, 1, 1], [], []>} : vector<8x128xbf16>, vector<128x512xbf16>, vector<8x512xf32> -> vector<8x512xf32>
    %105 = arith.addf %101, %104 : vector<8x512xf32>
    %106 = vector.extract_strided_slice %105 {offsets = [0, 0], sizes = [8, 128], strides = [1, 1]} : vector<8x512xf32> to vector<8x128xf32>
    %107 = arith.negf %106 : vector<8x128xf32>
    %108 = math.exp %107 : vector<8x128xf32>
    %cst_36 = arith.constant 1.000000e+00 : f32
    %109 = vector.broadcast %cst_36 : f32 to vector<8x128xf32>
    %110 = arith.addf %109, %108 : vector<8x128xf32>
    %111 = arith.divf %109, %110 : vector<8x128xf32>
    %112 = vector.extract_strided_slice %105 {offsets = [0, 128], sizes = [8, 128], strides = [1, 1]} : vector<8x512xf32> to vector<8x128xf32>
    %113 = arith.negf %112 : vector<8x128xf32>
    %114 = math.exp %113 : vector<8x128xf32>
    %cst_37 = arith.constant 1.000000e+00 : f32
    %115 = vector.broadcast %cst_37 : f32 to vector<8x128xf32>
    %116 = arith.addf %115, %114 : vector<8x128xf32>
    %117 = arith.divf %115, %116 : vector<8x128xf32>
    %118 = vector.extract_strided_slice %105 {offsets = [0, 256], sizes = [8, 128], strides = [1, 1]} : vector<8x512xf32> to vector<8x128xf32>
    %119 = math.tanh %118 : vector<8x128xf32>
    %120 = vector.extract_strided_slice %105 {offsets = [0, 384], sizes = [8, 128], strides = [1, 1]} : vector<8x512xf32> to vector<8x128xf32>
    %121 = arith.negf %120 : vector<8x128xf32>
    %122 = math.exp %121 : vector<8x128xf32>
    %cst_38 = arith.constant 1.000000e+00 : f32
    %123 = vector.broadcast %cst_38 : f32 to vector<8x128xf32>
    %124 = arith.addf %123, %122 : vector<8x128xf32>
    %125 = arith.divf %123, %124 : vector<8x128xf32>
    %126 = arith.mulf %117, %97 : vector<8x128xf32>
    %127 = arith.mulf %111, %119 : vector<8x128xf32>
    %128 = arith.addf %126, %127 : vector<8x128xf32>
    %129 = math.tanh %128 : vector<8x128xf32>
    %130 = arith.mulf %125, %129 : vector<8x128xf32>
    %131 = arith.addi %11, %c2_i32 : i32
    %132 = vector.broadcast %131 : i32 to vector<8x1xi32>
    %133 = arith.cmpi slt, %132, %10 : vector<8x1xi32>
    %134 = vector.shape_cast %133 : vector<8x1xi1> to vector<8x1xi1>
    %135 = vector.broadcast %134 : vector<8x1xi1> to vector<8x128xi1>
    %136 = arith.select %135, %130, %94 : vector<8x128xi1>, vector<8x128xf32>
    %137 = vector.shape_cast %133 : vector<8x1xi1> to vector<8x1xi1>
    %138 = vector.broadcast %137 : vector<8x1xi1> to vector<8x128xi1>
    %139 = arith.select %138, %128, %97 : vector<8x128xi1>, vector<8x128xf32>
    %c3_i32 = arith.constant 3 : i32
    %c8_i32_39 = arith.constant 8 : i32
    %140 = arith.muli %c3_i32, %c8_i32_39 : i32
    %141 = tpu.assume_multiple %140, 8 : i32
    %142 = arith.index_cast %141 : i32 to index
    %c0_40 = arith.constant 0 : index
    %143 = vector.load %arg11[%142, %c0_40] : memref<64x512xf32, #tpu.memory_space<vmem>>, vector<8x512xf32>
    %144 = arith.truncf %136 : vector<8x128xf32> to vector<8x128xbf16>
    %c0_41 = arith.constant 0 : index
    %c0_42 = arith.constant 0 : index
    %145 = vector.load %arg4[%c0_41, %c0_42] : memref<128x512xbf16, #tpu.memory_space<vmem>>, vector<128x512xbf16>
    %cst_43 = arith.constant dense<0.000000e+00> : vector<8x512xf32>
    %146 = tpu.matmul %144, %145, %cst_43 {dimension_numbers = #tpu.dot_dimension_numbers<[1], [0], [0], [1], [0, 0, 1, 1], [], []>} : vector<8x128xbf16>, vector<128x512xbf16>, vector<8x512xf32> -> vector<8x512xf32>
    %147 = arith.addf %143, %146 : vector<8x512xf32>
    %148 = vector.extract_strided_slice %147 {offsets = [0, 0], sizes = [8, 128], strides = [1, 1]} : vector<8x512xf32> to vector<8x128xf32>
    %149 = arith.negf %148 : vector<8x128xf32>
    %150 = math.exp %149 : vector<8x128xf32>
    %cst_44 = arith.constant 1.000000e+00 : f32
    %151 = vector.broadcast %cst_44 : f32 to vector<8x128xf32>
    %152 = arith.addf %151, %150 : vector<8x128xf32>
    %153 = arith.divf %151, %152 : vector<8x128xf32>
    %154 = vector.extract_strided_slice %147 {offsets = [0, 128], sizes = [8, 128], strides = [1, 1]} : vector<8x512xf32> to vector<8x128xf32>
    %155 = arith.negf %154 : vector<8x128xf32>
    %156 = math.exp %155 : vector<8x128xf32>
    %cst_45 = arith.constant 1.000000e+00 : f32
    %157 = vector.broadcast %cst_45 : f32 to vector<8x128xf32>
    %158 = arith.addf %157, %156 : vector<8x128xf32>
    %159 = arith.divf %157, %158 : vector<8x128xf32>
    %160 = vector.extract_strided_slice %147 {offsets = [0, 256], sizes = [8, 128], strides = [1, 1]} : vector<8x512xf32> to vector<8x128xf32>
    %161 = math.tanh %160 : vector<8x128xf32>
    %162 = vector.extract_strided_slice %147 {offsets = [0, 384], sizes = [8, 128], strides = [1, 1]} : vector<8x512xf32> to vector<8x128xf32>
    %163 = arith.negf %162 : vector<8x128xf32>
    %164 = math.exp %163 : vector<8x128xf32>
    %cst_46 = arith.constant 1.000000e+00 : f32
    %165 = vector.broadcast %cst_46 : f32 to vector<8x128xf32>
    %166 = arith.addf %165, %164 : vector<8x128xf32>
    %167 = arith.divf %165, %166 : vector<8x128xf32>
    %168 = arith.mulf %159, %139 : vector<8x128xf32>
    %169 = arith.mulf %153, %161 : vector<8x128xf32>
    %170 = arith.addf %168, %169 : vector<8x128xf32>
    %171 = math.tanh %170 : vector<8x128xf32>
    %172 = arith.mulf %167, %171 : vector<8x128xf32>
    %173 = arith.addi %11, %c3_i32 : i32
    %174 = vector.broadcast %173 : i32 to vector<8x1xi32>
    %175 = arith.cmpi slt, %174, %10 : vector<8x1xi32>
    %176 = vector.shape_cast %175 : vector<8x1xi1> to vector<8x1xi1>
    %177 = vector.broadcast %176 : vector<8x1xi1> to vector<8x128xi1>
    %178 = arith.select %177, %172, %136 : vector<8x128xi1>, vector<8x128xf32>
    %179 = vector.shape_cast %175 : vector<8x1xi1> to vector<8x1xi1>
    %180 = vector.broadcast %179 : vector<8x1xi1> to vector<8x128xi1>
    %181 = arith.select %180, %170, %139 : vector<8x128xi1>, vector<8x128xf32>
    %c4_i32 = arith.constant 4 : i32
    %c8_i32_47 = arith.constant 8 : i32
    %182 = arith.muli %c4_i32, %c8_i32_47 : i32
    %183 = tpu.assume_multiple %182, 8 : i32
    %184 = arith.index_cast %183 : i32 to index
    %c0_48 = arith.constant 0 : index
    %185 = vector.load %arg11[%184, %c0_48] : memref<64x512xf32, #tpu.memory_space<vmem>>, vector<8x512xf32>
    %186 = arith.truncf %178 : vector<8x128xf32> to vector<8x128xbf16>
    %c0_49 = arith.constant 0 : index
    %c0_50 = arith.constant 0 : index
    %187 = vector.load %arg4[%c0_49, %c0_50] : memref<128x512xbf16, #tpu.memory_space<vmem>>, vector<128x512xbf16>
    %cst_51 = arith.constant dense<0.000000e+00> : vector<8x512xf32>
    %188 = tpu.matmul %186, %187, %cst_51 {dimension_numbers = #tpu.dot_dimension_numbers<[1], [0], [0], [1], [0, 0, 1, 1], [], []>} : vector<8x128xbf16>, vector<128x512xbf16>, vector<8x512xf32> -> vector<8x512xf32>
    %189 = arith.addf %185, %188 : vector<8x512xf32>
    %190 = vector.extract_strided_slice %189 {offsets = [0, 0], sizes = [8, 128], strides = [1, 1]} : vector<8x512xf32> to vector<8x128xf32>
    %191 = arith.negf %190 : vector<8x128xf32>
    %192 = math.exp %191 : vector<8x128xf32>
    %cst_52 = arith.constant 1.000000e+00 : f32
    %193 = vector.broadcast %cst_52 : f32 to vector<8x128xf32>
    %194 = arith.addf %193, %192 : vector<8x128xf32>
    %195 = arith.divf %193, %194 : vector<8x128xf32>
    %196 = vector.extract_strided_slice %189 {offsets = [0, 128], sizes = [8, 128], strides = [1, 1]} : vector<8x512xf32> to vector<8x128xf32>
    %197 = arith.negf %196 : vector<8x128xf32>
    %198 = math.exp %197 : vector<8x128xf32>
    %cst_53 = arith.constant 1.000000e+00 : f32
    %199 = vector.broadcast %cst_53 : f32 to vector<8x128xf32>
    %200 = arith.addf %199, %198 : vector<8x128xf32>
    %201 = arith.divf %199, %200 : vector<8x128xf32>
    %202 = vector.extract_strided_slice %189 {offsets = [0, 256], sizes = [8, 128], strides = [1, 1]} : vector<8x512xf32> to vector<8x128xf32>
    %203 = math.tanh %202 : vector<8x128xf32>
    %204 = vector.extract_strided_slice %189 {offsets = [0, 384], sizes = [8, 128], strides = [1, 1]} : vector<8x512xf32> to vector<8x128xf32>
    %205 = arith.negf %204 : vector<8x128xf32>
    %206 = math.exp %205 : vector<8x128xf32>
    %cst_54 = arith.constant 1.000000e+00 : f32
    %207 = vector.broadcast %cst_54 : f32 to vector<8x128xf32>
    %208 = arith.addf %207, %206 : vector<8x128xf32>
    %209 = arith.divf %207, %208 : vector<8x128xf32>
    %210 = arith.mulf %201, %181 : vector<8x128xf32>
    %211 = arith.mulf %195, %203 : vector<8x128xf32>
    %212 = arith.addf %210, %211 : vector<8x128xf32>
    %213 = math.tanh %212 : vector<8x128xf32>
    %214 = arith.mulf %209, %213 : vector<8x128xf32>
    %215 = arith.addi %11, %c4_i32 : i32
    %216 = vector.broadcast %215 : i32 to vector<8x1xi32>
    %217 = arith.cmpi slt, %216, %10 : vector<8x1xi32>
    %218 = vector.shape_cast %217 : vector<8x1xi1> to vector<8x1xi1>
    %219 = vector.broadcast %218 : vector<8x1xi1> to vector<8x128xi1>
    %220 = arith.select %219, %214, %178 : vector<8x128xi1>, vector<8x128xf32>
    %221 = vector.shape_cast %217 : vector<8x1xi1> to vector<8x1xi1>
    %222 = vector.broadcast %221 : vector<8x1xi1> to vector<8x128xi1>
    %223 = arith.select %222, %212, %181 : vector<8x128xi1>, vector<8x128xf32>
    %c5_i32 = arith.constant 5 : i32
    %c8_i32_55 = arith.constant 8 : i32
    %224 = arith.muli %c5_i32, %c8_i32_55 : i32
    %225 = tpu.assume_multiple %224, 8 : i32
    %226 = arith.index_cast %225 : i32 to index
    %c0_56 = arith.constant 0 : index
    %227 = vector.load %arg11[%226, %c0_56] : memref<64x512xf32, #tpu.memory_space<vmem>>, vector<8x512xf32>
    %228 = arith.truncf %220 : vector<8x128xf32> to vector<8x128xbf16>
    %c0_57 = arith.constant 0 : index
    %c0_58 = arith.constant 0 : index
    %229 = vector.load %arg4[%c0_57, %c0_58] : memref<128x512xbf16, #tpu.memory_space<vmem>>, vector<128x512xbf16>
    %cst_59 = arith.constant dense<0.000000e+00> : vector<8x512xf32>
    %230 = tpu.matmul %228, %229, %cst_59 {dimension_numbers = #tpu.dot_dimension_numbers<[1], [0], [0], [1], [0, 0, 1, 1], [], []>} : vector<8x128xbf16>, vector<128x512xbf16>, vector<8x512xf32> -> vector<8x512xf32>
    %231 = arith.addf %227, %230 : vector<8x512xf32>
    %232 = vector.extract_strided_slice %231 {offsets = [0, 0], sizes = [8, 128], strides = [1, 1]} : vector<8x512xf32> to vector<8x128xf32>
    %233 = arith.negf %232 : vector<8x128xf32>
    %234 = math.exp %233 : vector<8x128xf32>
    %cst_60 = arith.constant 1.000000e+00 : f32
    %235 = vector.broadcast %cst_60 : f32 to vector<8x128xf32>
    %236 = arith.addf %235, %234 : vector<8x128xf32>
    %237 = arith.divf %235, %236 : vector<8x128xf32>
    %238 = vector.extract_strided_slice %231 {offsets = [0, 128], sizes = [8, 128], strides = [1, 1]} : vector<8x512xf32> to vector<8x128xf32>
    %239 = arith.negf %238 : vector<8x128xf32>
    %240 = math.exp %239 : vector<8x128xf32>
    %cst_61 = arith.constant 1.000000e+00 : f32
    %241 = vector.broadcast %cst_61 : f32 to vector<8x128xf32>
    %242 = arith.addf %241, %240 : vector<8x128xf32>
    %243 = arith.divf %241, %242 : vector<8x128xf32>
    %244 = vector.extract_strided_slice %231 {offsets = [0, 256], sizes = [8, 128], strides = [1, 1]} : vector<8x512xf32> to vector<8x128xf32>
    %245 = math.tanh %244 : vector<8x128xf32>
    %246 = vector.extract_strided_slice %231 {offsets = [0, 384], sizes = [8, 128], strides = [1, 1]} : vector<8x512xf32> to vector<8x128xf32>
    %247 = arith.negf %246 : vector<8x128xf32>
    %248 = math.exp %247 : vector<8x128xf32>
    %cst_62 = arith.constant 1.000000e+00 : f32
    %249 = vector.broadcast %cst_62 : f32 to vector<8x128xf32>
    %250 = arith.addf %249, %248 : vector<8x128xf32>
    %251 = arith.divf %249, %250 : vector<8x128xf32>
    %252 = arith.mulf %243, %223 : vector<8x128xf32>
    %253 = arith.mulf %237, %245 : vector<8x128xf32>
    %254 = arith.addf %252, %253 : vector<8x128xf32>
    %255 = math.tanh %254 : vector<8x128xf32>
    %256 = arith.mulf %251, %255 : vector<8x128xf32>
    %257 = arith.addi %11, %c5_i32 : i32
    %258 = vector.broadcast %257 : i32 to vector<8x1xi32>
    %259 = arith.cmpi slt, %258, %10 : vector<8x1xi32>
    %260 = vector.shape_cast %259 : vector<8x1xi1> to vector<8x1xi1>
    %261 = vector.broadcast %260 : vector<8x1xi1> to vector<8x128xi1>
    %262 = arith.select %261, %256, %220 : vector<8x128xi1>, vector<8x128xf32>
    %263 = vector.shape_cast %259 : vector<8x1xi1> to vector<8x1xi1>
    %264 = vector.broadcast %263 : vector<8x1xi1> to vector<8x128xi1>
    %265 = arith.select %264, %254, %223 : vector<8x128xi1>, vector<8x128xf32>
    %c6_i32 = arith.constant 6 : i32
    %c8_i32_63 = arith.constant 8 : i32
    %266 = arith.muli %c6_i32, %c8_i32_63 : i32
    %267 = tpu.assume_multiple %266, 8 : i32
    %268 = arith.index_cast %267 : i32 to index
    %c0_64 = arith.constant 0 : index
    %269 = vector.load %arg11[%268, %c0_64] : memref<64x512xf32, #tpu.memory_space<vmem>>, vector<8x512xf32>
    %270 = arith.truncf %262 : vector<8x128xf32> to vector<8x128xbf16>
    %c0_65 = arith.constant 0 : index
    %c0_66 = arith.constant 0 : index
    %271 = vector.load %arg4[%c0_65, %c0_66] : memref<128x512xbf16, #tpu.memory_space<vmem>>, vector<128x512xbf16>
    %cst_67 = arith.constant dense<0.000000e+00> : vector<8x512xf32>
    %272 = tpu.matmul %270, %271, %cst_67 {dimension_numbers = #tpu.dot_dimension_numbers<[1], [0], [0], [1], [0, 0, 1, 1], [], []>} : vector<8x128xbf16>, vector<128x512xbf16>, vector<8x512xf32> -> vector<8x512xf32>
    %273 = arith.addf %269, %272 : vector<8x512xf32>
    %274 = vector.extract_strided_slice %273 {offsets = [0, 0], sizes = [8, 128], strides = [1, 1]} : vector<8x512xf32> to vector<8x128xf32>
    %275 = arith.negf %274 : vector<8x128xf32>
    %276 = math.exp %275 : vector<8x128xf32>
    %cst_68 = arith.constant 1.000000e+00 : f32
    %277 = vector.broadcast %cst_68 : f32 to vector<8x128xf32>
    %278 = arith.addf %277, %276 : vector<8x128xf32>
    %279 = arith.divf %277, %278 : vector<8x128xf32>
    %280 = vector.extract_strided_slice %273 {offsets = [0, 128], sizes = [8, 128], strides = [1, 1]} : vector<8x512xf32> to vector<8x128xf32>
    %281 = arith.negf %280 : vector<8x128xf32>
    %282 = math.exp %281 : vector<8x128xf32>
    %cst_69 = arith.constant 1.000000e+00 : f32
    %283 = vector.broadcast %cst_69 : f32 to vector<8x128xf32>
    %284 = arith.addf %283, %282 : vector<8x128xf32>
    %285 = arith.divf %283, %284 : vector<8x128xf32>
    %286 = vector.extract_strided_slice %273 {offsets = [0, 256], sizes = [8, 128], strides = [1, 1]} : vector<8x512xf32> to vector<8x128xf32>
    %287 = math.tanh %286 : vector<8x128xf32>
    %288 = vector.extract_strided_slice %273 {offsets = [0, 384], sizes = [8, 128], strides = [1, 1]} : vector<8x512xf32> to vector<8x128xf32>
    %289 = arith.negf %288 : vector<8x128xf32>
    %290 = math.exp %289 : vector<8x128xf32>
    %cst_70 = arith.constant 1.000000e+00 : f32
    %291 = vector.broadcast %cst_70 : f32 to vector<8x128xf32>
    %292 = arith.addf %291, %290 : vector<8x128xf32>
    %293 = arith.divf %291, %292 : vector<8x128xf32>
    %294 = arith.mulf %285, %265 : vector<8x128xf32>
    %295 = arith.mulf %279, %287 : vector<8x128xf32>
    %296 = arith.addf %294, %295 : vector<8x128xf32>
    %297 = math.tanh %296 : vector<8x128xf32>
    %298 = arith.mulf %293, %297 : vector<8x128xf32>
    %299 = arith.addi %11, %c6_i32 : i32
    %300 = vector.broadcast %299 : i32 to vector<8x1xi32>
    %301 = arith.cmpi slt, %300, %10 : vector<8x1xi32>
    %302 = vector.shape_cast %301 : vector<8x1xi1> to vector<8x1xi1>
    %303 = vector.broadcast %302 : vector<8x1xi1> to vector<8x128xi1>
    %304 = arith.select %303, %298, %262 : vector<8x128xi1>, vector<8x128xf32>
    %305 = vector.shape_cast %301 : vector<8x1xi1> to vector<8x1xi1>
    %306 = vector.broadcast %305 : vector<8x1xi1> to vector<8x128xi1>
    %307 = arith.select %306, %296, %265 : vector<8x128xi1>, vector<8x128xf32>
    %c7_i32 = arith.constant 7 : i32
    %c8_i32_71 = arith.constant 8 : i32
    %308 = arith.muli %c7_i32, %c8_i32_71 : i32
    %309 = tpu.assume_multiple %308, 8 : i32
    %310 = arith.index_cast %309 : i32 to index
    %c0_72 = arith.constant 0 : index
    %311 = vector.load %arg11[%310, %c0_72] : memref<64x512xf32, #tpu.memory_space<vmem>>, vector<8x512xf32>
    %312 = arith.truncf %304 : vector<8x128xf32> to vector<8x128xbf16>
    %c0_73 = arith.constant 0 : index
    %c0_74 = arith.constant 0 : index
    %313 = vector.load %arg4[%c0_73, %c0_74] : memref<128x512xbf16, #tpu.memory_space<vmem>>, vector<128x512xbf16>
    %cst_75 = arith.constant dense<0.000000e+00> : vector<8x512xf32>
    %314 = tpu.matmul %312, %313, %cst_75 {dimension_numbers = #tpu.dot_dimension_numbers<[1], [0], [0], [1], [0, 0, 1, 1], [], []>} : vector<8x128xbf16>, vector<128x512xbf16>, vector<8x512xf32> -> vector<8x512xf32>
    %315 = arith.addf %311, %314 : vector<8x512xf32>
    %316 = vector.extract_strided_slice %315 {offsets = [0, 0], sizes = [8, 128], strides = [1, 1]} : vector<8x512xf32> to vector<8x128xf32>
    %317 = arith.negf %316 : vector<8x128xf32>
    %318 = math.exp %317 : vector<8x128xf32>
    %cst_76 = arith.constant 1.000000e+00 : f32
    %319 = vector.broadcast %cst_76 : f32 to vector<8x128xf32>
    %320 = arith.addf %319, %318 : vector<8x128xf32>
    %321 = arith.divf %319, %320 : vector<8x128xf32>
    %322 = vector.extract_strided_slice %315 {offsets = [0, 128], sizes = [8, 128], strides = [1, 1]} : vector<8x512xf32> to vector<8x128xf32>
    %323 = arith.negf %322 : vector<8x128xf32>
    %324 = math.exp %323 : vector<8x128xf32>
    %cst_77 = arith.constant 1.000000e+00 : f32
    %325 = vector.broadcast %cst_77 : f32 to vector<8x128xf32>
    %326 = arith.addf %325, %324 : vector<8x128xf32>
    %327 = arith.divf %325, %326 : vector<8x128xf32>
    %328 = vector.extract_strided_slice %315 {offsets = [0, 256], sizes = [8, 128], strides = [1, 1]} : vector<8x512xf32> to vector<8x128xf32>
    %329 = math.tanh %328 : vector<8x128xf32>
    %330 = vector.extract_strided_slice %315 {offsets = [0, 384], sizes = [8, 128], strides = [1, 1]} : vector<8x512xf32> to vector<8x128xf32>
    %331 = arith.negf %330 : vector<8x128xf32>
    %332 = math.exp %331 : vector<8x128xf32>
    %cst_78 = arith.constant 1.000000e+00 : f32
    %333 = vector.broadcast %cst_78 : f32 to vector<8x128xf32>
    %334 = arith.addf %333, %332 : vector<8x128xf32>
    %335 = arith.divf %333, %334 : vector<8x128xf32>
    %336 = arith.mulf %327, %307 : vector<8x128xf32>
    %337 = arith.mulf %321, %329 : vector<8x128xf32>
    %338 = arith.addf %336, %337 : vector<8x128xf32>
    %339 = math.tanh %338 : vector<8x128xf32>
    %340 = arith.mulf %335, %339 : vector<8x128xf32>
    %341 = arith.addi %11, %c7_i32 : i32
    %342 = vector.broadcast %341 : i32 to vector<8x1xi32>
    %343 = arith.cmpi slt, %342, %10 : vector<8x1xi32>
    %344 = vector.shape_cast %343 : vector<8x1xi1> to vector<8x1xi1>
    %345 = vector.broadcast %344 : vector<8x1xi1> to vector<8x128xi1>
    %346 = arith.select %345, %340, %304 : vector<8x128xi1>, vector<8x128xf32>
    %347 = vector.shape_cast %343 : vector<8x1xi1> to vector<8x1xi1>
    %348 = vector.broadcast %347 : vector<8x1xi1> to vector<8x128xi1>
    %349 = arith.select %348, %338, %307 : vector<8x128xi1>, vector<8x128xf32>
    %c8_i32_79 = arith.constant 8 : i32
    %c0_80 = arith.constant 0 : index
    %c0_81 = arith.constant 0 : index
    %350 = vector.load %arg9[%c0_80, %c0_81] : memref<8x128xf32, #tpu.memory_space<vmem>>, vector<8x128xf32>
    tpu.vector_store %arg9[%c0_80, %c0_81], %346 {strides = array<i32>} : memref<8x128xf32, #tpu.memory_space<vmem>>, vector<8x128xf32>,
    %c0_82 = arith.constant 0 : index
    %c0_83 = arith.constant 0 : index
    %351 = vector.load %arg10[%c0_82, %c0_83] : memref<8x128xf32, #tpu.memory_space<vmem>>, vector<8x128xf32>
    tpu.vector_store %arg10[%c0_82, %c0_83], %349 {strides = array<i32>} : memref<8x128xf32, #tpu.memory_space<vmem>>, vector<8x128xf32>,
    %c0_i32_84 = arith.constant 0 : i32
    %352 = arith.cmpi eq, %arg0, %c0_i32_84 : i32
    %353 = arith.extui %352 : i1 to i32
    %c0_i32_85 = arith.constant 0 : i32
    %354 = arith.cmpi ne, %353, %c0_i32_85 : i32
    scf.if %354 {
      %c0_86 = arith.constant 0 : index
      %c0_87 = arith.constant 0 : index
      %355 = vector.load %arg9[%c0_86, %c0_87] : memref<8x128xf32, #tpu.memory_space<vmem>>, vector<8x128xf32>
      %c0_88 = arith.constant 0 : index
      %c0_89 = arith.constant 0 : index
      %356 = vector.load %arg6[%c0_88, %c0_89] : memref<128x128xf32, #tpu.memory_space<vmem>>, vector<128x128xf32>
      %cst_90 = arith.constant dense<0.000000e+00> : vector<8x128xf32>
      %357 = tpu.matmul %355, %356, %cst_90 {dimension_numbers = #tpu.dot_dimension_numbers<[1], [0], [0], [1], [0, 0, 1, 1], [], []>} : vector<8x128xf32>, vector<128x128xf32>, vector<8x128xf32> -> vector<8x128xf32>
      %c0_91 = arith.constant 0 : index
      %c0_92 = arith.constant 0 : index
      %358 = vector.load %arg7[%c0_91, %c0_92] : memref<1x128xf32, #tpu.memory_space<vmem>>, vector<1x128xf32>
      %359 = vector.broadcast %358 : vector<1x128xf32> to vector<8x128xf32>
      %360 = arith.addf %357, %359 : vector<8x128xf32>
      %c0_93 = arith.constant 0 : index
      %c0_94 = arith.constant 0 : index
      %361 = vector.load %arg8[%c0_93, %c0_94] : memref<8x128xf32, #tpu.memory_space<vmem>>, vector<8x128xf32>
      tpu.vector_store %arg8[%c0_93, %c0_94], %360 {strides = array<i32>} : memref<8x128xf32, #tpu.memory_space<vmem>>, vector<8x128xf32>,
    } else {
    }
    return
  }
  func.func @transform_0(%arg0: i32) -> (i32, i32) {
    %c0_i32 = arith.constant 0 : i32
    %c0_i32_0 = arith.constant 0 : i32
    return %arg0, %c0_i32 : i32, i32
  }
  func.func @transform_1(%arg0: i32) -> (i32, i32) {
    %c0_i32 = arith.constant 0 : i32
    %c0_i32_0 = arith.constant 0 : i32
    %c0_i32_1 = arith.constant 0 : i32
    return %c0_i32, %c0_i32_0 : i32, i32
  }
  func.func @transform_2(%arg0: i32) -> (i32, i32) {
    %c0_i32 = arith.constant 0 : i32
    %c0_i32_0 = arith.constant 0 : i32
    %c0_i32_1 = arith.constant 0 : i32
    return %c0_i32, %c0_i32_0 : i32, i32
  }
  func.func @transform_3(%arg0: i32) -> (i32, i32) {
    %c0_i32 = arith.constant 0 : i32
    %c0_i32_0 = arith.constant 0 : i32
    %c0_i32_1 = arith.constant 0 : i32
    return %c0_i32, %c0_i32_0 : i32, i32
  }
  func.func @transform_4(%arg0: i32) -> (i32, i32) {
    %c0_i32 = arith.constant 0 : i32
    %c0_i32_0 = arith.constant 0 : i32
    %c0_i32_1 = arith.constant 0 : i32
    return %c0_i32, %c0_i32_0 : i32, i32
  }
  func.func @transform_5(%arg0: i32) -> (i32, i32) {
    %c0_i32 = arith.constant 0 : i32
    %c0_i32_0 = arith.constant 0 : i32
    %c0_i32_1 = arith.constant 0 : i32
    return %c0_i32, %c0_i32_0 : i32, i32
  }
  func.func @transform_6(%arg0: i32) -> (i32, i32) {
    %c0_i32 = arith.constant 0 : i32
    %c0_i32_0 = arith.constant 0 : i32
    %c0_i32_1 = arith.constant 0 : i32
    return %c0_i32, %c0_i32_0 : i32, i32
  }
  func.func @transform_7(%arg0: i32) -> (i32, i32) {
    %c0_i32 = arith.constant 0 : i32
    %c0_i32_0 = arith.constant 0 : i32
    %c0_i32_1 = arith.constant 0 : i32
    return %c0_i32, %c0_i32_0 : i32, i32
  }
}

</mosaic_0001>

<llo_original>
// kernel: tpu_custom_call.1
$region0: #{tpu_custom_call.1}
  #allocation0 [shape = 'u32[]', space=smem, size = 0x4, offset = 0x4, fixed_abs, tag = 'smem constant byte address 0x4 - core index']
  #allocation1 [shape = 'u32[144,128]{1,0:T(1,128)}', space=vmem, size = 0x12000, scoped, tag = 'internal scratch']
  #allocation2 [shape = 'f32[8,128]{1,0:T(8,128)}', space=vmem, size = 0x1000, scoped, tag = 'scratch operand']
  #allocation3 [shape = 'f32[8,128]{1,0:T(8,128)}', space=vmem, size = 0x1000, scoped, tag = 'scratch operand']
  #allocation4 [shape = 'f32[64,512]{1,0:T(8,128)}', space=vmem, size = 0x20000, scoped, tag = 'scratch operand']
  %s0 = inlined_call_operand.vmem [shape: bf16[64,16], index: 0, kind: input, shape index: {}]
  %s1 = inlined_call_operand.vmem [shape: s32[8,1], index: 1, kind: input, shape index: {}]
  %s2 = inlined_call_operand.vmem [shape: bf16[16,512], index: 2, kind: input, shape index: {}]
  %s3 = inlined_call_operand.hbm [shape: bf16[128,512], index: 3, kind: input, shape index: {}]
  %s4 = inlined_call_operand.vmem [shape: f32[1,512], index: 4, kind: input, shape index: {}]
  %s5 = inlined_call_operand.hbm [shape: f32[128,128], index: 5, kind: input, shape index: {}]
  %s6 = inlined_call_operand.vmem [shape: f32[1,128], index: 6, kind: input, shape index: {}]
  %s7 = inlined_call_operand.hbm [shape: f32[8,128], index: 7, kind: output, shape index: {}]
  %s8 = sld [smem:[#allocation0]]
  $region54: #{tpu_custom_call.1} parent=0
    _
  %s10 = ssub.s32 1, %s8
  %s11 = scalar_select 0, %s10, %s8
  $region1: #{tpu_custom_call.1} parent=0
    #allocation5 [shape = 'u8[131072]{0}', space=vmem, size = 0x20000, scoped, tag = 'input window, operand 3, single buffered']
    #allocation6 [shape = 's32[1]{0}', space=sflag, size = 0x4, scoped, tag = 'scoped memory for tpu_custom_call.1']
    #allocation7 [shape = 's32[1]{0}', space=sflag, size = 0x4, scoped, tag = 'scoped memory for tpu_custom_call.1']
    #allocation8 [shape = 'u8[65536]{0}', space=vmem, size = 0x10000, scoped, tag = 'input window, operand 5, single buffered']
    #allocation9 [shape = 's32[1]{0}', space=sflag, size = 0x4, scoped, tag = 'scoped memory for tpu_custom_call.1']
    #allocation10 [shape = 'u8[4096]{0}', space=vmem, size = 0x1000, scoped, tag = 'output window, operand 0, single buffered']
    %12 = vsyncpa [#allocation6], 0
    %13 = vsyncpa [#allocation9], 0
    %14 = vsyncpa [#allocation7], 0
    // Predicated region
    $region2: #{tpu_custom_call.1} parent=1 // pred_check
      _
    $region3: #{tpu_custom_call.1} parent=1 // pred_check_branch
      %16 = sbr.rel (0) target = $region5
    $region4: #{tpu_custom_call.1} parent=1 // pred_region
      _
    $region5: #{tpu_custom_call.1} parent=1 // pred_fallthru
      _
    // Predicated region
    $region6: #{tpu_custom_call.1} parent=1 // pred_check
      _
    $region7: #{tpu_custom_call.1} parent=1 // pred_check_branch
      %18 = sbr.rel (0) target = $region9
    $region8: #{tpu_custom_call.1} parent=1 // pred_region
      _
    $region9: #{tpu_custom_call.1} parent=1 // pred_fallthru
      _
    // Predicated region
    $region10: #{tpu_custom_call.1} parent=1 // pred_check
      _
    $region11: #{tpu_custom_call.1} parent=1 // pred_check_branch
      %20 = sbr.rel (0) target = $region13
    $region12: #{tpu_custom_call.1} parent=1 // pred_region
      _
    $region13: #{tpu_custom_call.1} parent=1 // pred_fallthru
      _
    // Predicated region
    $region14: #{tpu_custom_call.1} parent=1 // pred_check
      _
    $region15: #{tpu_custom_call.1} parent=1 // pred_check_branch
      %22 = sbr.rel (0) target = $region17
    $region16: #{tpu_custom_call.1} parent=1 // pred_region
      %s24 = ssub.s32 4096, 4096
      %25 = vsyncadd [#allocation6], %s24
      %s26 = sshll.u32 [#allocation5], 4
      %s27 = int_to_ptr.vmem [resolvable:$true] %s26
      %32 = dma.hbm_to_vmem [thread:$0]  %s3, 4096, %s27, [#allocation6], 256, 256, 16
    $region17: #{tpu_custom_call.1} parent=1 // pred_fallthru
      _
    // Predicated region
    $region18: #{tpu_custom_call.1} parent=1 // pred_check
      _
    $region19: #{tpu_custom_call.1} parent=1 // pred_check_branch
      %34 = sbr.rel (0) target = $region21
    $region20: #{tpu_custom_call.1} parent=1 // pred_region
      _
    $region21: #{tpu_custom_call.1} parent=1 // pred_fallthru
      _
    // Predicated region
    $region22: #{tpu_custom_call.1} parent=1 // pred_check
      _
    $region23: #{tpu_custom_call.1} parent=1 // pred_check_branch
      %36 = sbr.rel (0) target = $region25
    $region24: #{tpu_custom_call.1} parent=1 // pred_region
      %s38 = ssub.s32 2048, 2048
      %39 = vsyncadd [#allocation9], %s38
      %s40 = sshll.u32 [#allocation8], 4
      %s41 = int_to_ptr.vmem [resolvable:$true] %s40
      %46 = dma.hbm_to_vmem [thread:$0]  %s5, 2048, %s41, [#allocation9], 128, 128, 8
    $region25: #{tpu_custom_call.1} parent=1 // pred_fallthru
      _
    // Predicated region
    $region26: #{tpu_custom_call.1} parent=1 // pred_check
      _
    $region27: #{tpu_custom_call.1} parent=1 // pred_check_branch
      %48 = sbr.rel (0) target = $region29
    $region28: #{tpu_custom_call.1} parent=1 // pred_region
      _
    $region29: #{tpu_custom_call.1} parent=1 // pred_fallthru
      _
    // Predicated region
    $region30: #{tpu_custom_call.1} parent=1 // pred_check
      _
    $region31: #{tpu_custom_call.1} parent=1 // pred_check_branch
      %50 = sbr.rel (0) target = $region33
    $region32: #{tpu_custom_call.1} parent=1 // pred_region
      %51 = dma.done [#allocation6], 4096
    $region33: #{tpu_custom_call.1} parent=1 // pred_fallthru
      _
    // Predicated region
    $region34: #{tpu_custom_call.1} parent=1 // pred_check
      _
    $region35: #{tpu_custom_call.1} parent=1 // pred_check_branch
      %53 = sbr.rel (0) target = $region37
    $region36: #{tpu_custom_call.1} parent=1 // pred_region
      %54 = dma.done [#allocation9], 2048
    $region37: #{tpu_custom_call.1} parent=1 // pred_fallthru
      _
    %p56 = scmp.eq.s32.totalorder 0, 0
    // Predicated region
    $region38: #{tpu_custom_call.1} parent=1 // pred_check
      %p57 = pneg %p56
    $region39: #{tpu_custom_call.1} parent=1 // pred_check_branch
      %59 = sbr.rel (%p57) target = $region41
    $region40: #{tpu_custom_call.1} parent=1 // pred_region
      %60 = vst [vmem:[#allocation2] sm:$0xff] 0.0
      %61 = vst [vmem:[#allocation3] sm:$0xff] 0.0
    $region41: #{tpu_custom_call.1} parent=1 // pred_fallthru
      _
    %v62 = vld [vmem:[%s0] sm:$0xf]
    %v63 = vld [vmem:[%s0 + $0x4] sm:$0xf]
    %v64 = vld [vmem:[%s0 + $0x8] sm:$0xf]
    %v65 = vld [vmem:[%s0 + $0xc] sm:$0xf]
    %v66 = vld [vmem:[%s0 + $0x10] sm:$0xf]
    %v67 = vld [vmem:[%s0 + $0x14] sm:$0xf]
    %v68 = vld [vmem:[%s0 + $0x18] sm:$0xf]
    %v69 = vld [vmem:[%s0 + $0x1c] sm:$0xf]
    %v70 = vld [vmem:[%s2] sm:$0xff]
    %v71 = vld [vmem:[%s2 + $0x8] sm:$0xff]
    %v72 = vld [vmem:[%s2 + $0x10] sm:$0xff]
    %v73 = vld [vmem:[%s2 + $0x18] sm:$0xff]
    %v74 = vld [vmem:[%s4] sm:$0xf]
    %v76 = vlaneseq
    %v77 = vshrl.u32 %v76, 7
    %v78 = vsub.s32 0, %v77
    %v79 = vrot.slane %v74, %v78
    %v80 = vlaneseq
    %v81 = vshrl.u32 %v80, 7
    %v82 = vsub.s32 1, %v81
    %v83 = vrot.slane %v74, %v82
    %v84 = vlaneseq
    %v85 = vshrl.u32 %v84, 7
    %v86 = vsub.s32 2, %v85
    %v87 = vrot.slane %v74, %v86
    %v88 = vlaneseq
    %v89 = vshrl.u32 %v88, 7
    %v90 = vsub.s32 3, %v89
    %v91 = vrot.slane %v74, %v90
    %v104 = vunpack.c.l.b16 %v62
    %v105 = vunpack.c.l.b16 %v63
    %v106 = vunpack.c.l.b16 %v64
    %v107 = vunpack.c.l.b16 %v65
    %v108 = vunpack.c.l.b16 %v66
    %v109 = vunpack.c.l.b16 %v67
    %v110 = vunpack.c.l.b16 %v68
    %v111 = vunpack.c.l.b16 %v69
    %v112 = vpack.c.b16 %v105, %v104
    %v113 = vpack.c.b16 %v107, %v106
    %v114 = vpack.c.b16 %v109, %v108
    %v115 = vpack.c.b16 %v111, %v110
    %v120 = vunpack.c.l.b16 %v70
    %v121 = vunpack.c.h.b16 %v70
    %v122 = vunpack.c.l.b16 %v71
    %v123 = vunpack.c.h.b16 %v71
    %v124 = vunpack.c.l.b16 %v72
    %v125 = vunpack.c.h.b16 %v72
    %v126 = vunpack.c.l.b16 %v73
    %v127 = vunpack.c.h.b16 %v73
    %v128 = vpack.c.b16 %v124, %v120
    %v129 = vpack.c.b16 %v125, %v121
    %v130 = vpack.c.b16 %v126, %v122
    %v131 = vpack.c.b16 %v127, %v123
    %vm136 = vcmask 130048
    %v138 = vsel %vm136, %v112, 0
    %v141 = vsel %vm136, %v113, 0
    %v144 = vsel %vm136, %v114, 0
    %v147 = vsel %vm136, %v115, 0
    %149 = vmatprep.subr.bf16.mxu0 %v129
    %150 = vmatpush1.bf16.msra.mxu0 %v128
    %151 = vmatprep.subr.bf16.mxu0 0
    %152 = vmatpush1.bf16.msra.mxu0 0
    %153 = vmatprep.subr.bf16.mxu0 0
    %154 = vmatpush1.bf16.msra.mxu0 0
    %155 = vmatprep.subr.bf16.mxu0 0
    %156 = vmatpush1.bf16.msra.mxu0 0
    %157 = vmatprep.subr.bf16.mxu0 0
    %158 = vmatpush1.bf16.msra.mxu0 0
    %159 = vmatprep.subr.bf16.mxu0 0
    %160 = vmatpush1.bf16.msra.mxu0 0
    %161 = vmatprep.subr.bf16.mxu0 0
    %162 = vmatpush1.bf16.msra.mxu0 0
    %163 = vmatprep.subr.bf16.mxu0 0
    %164 = vmatpush1.bf16.msra.mxu0 0
    %165 = vmatprep.subr.bf16.mxu0 0
    %166 = vmatpush1.bf16.msra.mxu0 0
    %167 = vmatprep.subr.bf16.mxu0 0
    %168 = vmatpush1.bf16.msra.mxu0 0
    %169 = vmatprep.subr.bf16.mxu0 0
    %170 = vmatpush1.bf16.msra.mxu0 0
    %171 = vmatprep.subr.bf16.mxu0 0
    %172 = vmatpush1.bf16.msra.mxu0 0
    %173 = vmatprep.subr.bf16.mxu0 0
    %174 = vmatpush1.bf16.msra.mxu0 0
    %175 = vmatprep.subr.bf16.mxu0 0
    %176 = vmatpush1.bf16.msra.mxu0 0
    %177 = vmatprep.subr.bf16.mxu0 0
    %178 = vmatpush1.bf16.msra.mxu0 0
    %179 = vmatprep.subr.bf16.mxu0 0
    %180 = vmatpush1.bf16.msra.mxu0 0
    %181 = vmatprep.mubr.bf16.mxu0 0
    %182 = vmatmul.mubr.bf16.gmra.mrb[0].mxu0 %v138
    %v183 = vpop.f32.mrb[0].mxu0
    %v184 = vadd.f32 %v79, %v183
    %v185 = vpop.f32.mrb[0].mxu0
    %v186 = vadd.f32 %v83, %v185
    %v187 = vpop.f32.mrb[0].mxu0
    %v188 = vadd.f32 %v79, %v187
    %v189 = vpop.f32.mrb[0].mxu0
    %v190 = vadd.f32 %v83, %v189
    %191 = vmatprep.mubr.bf16.mxu0 0
    %192 = vmatmul.mubr.bf16.gmra.mrb[0].mxu0 %v141
    %v193 = vpop.f32.mrb[0].mxu0
    %v194 = vadd.f32 %v79, %v193
    %v195 = vpop.f32.mrb[0].mxu0
    %v196 = vadd.f32 %v83, %v195
    %v197 = vpop.f32.mrb[0].mxu0
    %v198 = vadd.f32 %v79, %v197
    %v199 = vpop.f32.mrb[0].mxu0
    %v200 = vadd.f32 %v83, %v199
    %201 = vmatprep.mubr.bf16.mxu0 0
    %202 = vmatmul.mubr.bf16.gmra.mrb[0].mxu0 %v144
    %v203 = vpop.f32.mrb[0].mxu0
    %v204 = vadd.f32 %v79, %v203
    %v205 = vpop.f32.mrb[0].mxu0
    %v206 = vadd.f32 %v83, %v205
    %v207 = vpop.f32.mrb[0].mxu0
    %v208 = vadd.f32 %v79, %v207
    %v209 = vpop.f32.mrb[0].mxu0
    %v210 = vadd.f32 %v83, %v209
    %211 = vmatprep.mubr.bf16.mxu0 0
    %212 = vmatmul.mubr.bf16.gmra.mrb[0].mxu0 %v147
    %v213 = vpop.f32.mrb[0].mxu0
    %v214 = vadd.f32 %v79, %v213
    %v215 = vpop.f32.mrb[0].mxu0
    %v216 = vadd.f32 %v83, %v215
    %v217 = vpop.f32.mrb[0].mxu0
    %v218 = vadd.f32 %v79, %v217
    %v219 = vpop.f32.mrb[0].mxu0
    %v220 = vadd.f32 %v83, %v219
    %221 = vdwg.mxu0
    %222 = vmatprep.subr.bf16.mxu0 %v131
    %223 = vmatpush1.bf16.msra.mxu0 %v130
    %224 = vmatprep.subr.bf16.mxu0 0
    %225 = vmatpush1.bf16.msra.mxu0 0
    %226 = vmatprep.subr.bf16.mxu0 0
    %227 = vmatpush1.bf16.msra.mxu0 0
    %228 = vmatprep.subr.bf16.mxu0 0
    %229 = vmatpush1.bf16.msra.mxu0 0
    %230 = vmatprep.subr.bf16.mxu0 0
    %231 = vmatpush1.bf16.msra.mxu0 0
    %232 = vmatprep.subr.bf16.mxu0 0
    %233 = vmatpush1.bf16.msra.mxu0 0
    %234 = vmatprep.subr.bf16.mxu0 0
    %235 = vmatpush1.bf16.msra.mxu0 0
    %236 = vmatprep.subr.bf16.mxu0 0
    %237 = vmatpush1.bf16.msra.mxu0 0
    %238 = vmatprep.subr.bf16.mxu0 0
    %239 = vmatpush1.bf16.msra.mxu0 0
    %240 = vmatprep.subr.bf16.mxu0 0
    %241 = vmatpush1.bf16.msra.mxu0 0
    %242 = vmatprep.subr.bf16.mxu0 0
    %243 = vmatpush1.bf16.msra.mxu0 0
    %244 = vmatprep.subr.bf16.mxu0 0
    %245 = vmatpush1.bf16.msra.mxu0 0
    %246 = vmatprep.subr.bf16.mxu0 0
    %247 = vmatpush1.bf16.msra.mxu0 0
    %248 = vmatprep.subr.bf16.mxu0 0
    %249 = vmatpush1.bf16.msra.mxu0 0
    %250 = vmatprep.subr.bf16.mxu0 0
    %251 = vmatpush1.bf16.msra.mxu0 0
    %252 = vmatprep.subr.bf16.mxu0 0
    %253 = vmatpush1.bf16.msra.mxu0 0
    %254 = vmatprep.mubr.bf16.mxu0 0
    %255 = vmatmul.mubr.bf16.gmra.mrb[0].mxu0 %v138
    %v256 = vpop.f32.mrb[0].mxu0
    %v257 = vadd.f32 %v87, %v256
    %v258 = vpop.f32.mrb[0].mxu0
    %v259 = vadd.f32 %v91, %v258
    %v260 = vpop.f32.mrb[0].mxu0
    %v261 = vadd.f32 %v87, %v260
    %v262 = vpop.f32.mrb[0].mxu0
    %v263 = vadd.f32 %v91, %v262
    %264 = vmatprep.mubr.bf16.mxu0 0
    %265 = vmatmul.mubr.bf16.gmra.mrb[0].mxu0 %v141
    %v266 = vpop.f32.mrb[0].mxu0
    %v267 = vadd.f32 %v87, %v266
    %v268 = vpop.f32.mrb[0].mxu0
    %v269 = vadd.f32 %v91, %v268
    %v270 = vpop.f32.mrb[0].mxu0
    %v271 = vadd.f32 %v87, %v270
    %v272 = vpop.f32.mrb[0].mxu0
    %v273 = vadd.f32 %v91, %v272
    %274 = vmatprep.mubr.bf16.mxu0 0
    %275 = vmatmul.mubr.bf16.gmra.mrb[0].mxu0 %v144
    %v276 = vpop.f32.mrb[0].mxu0
    %v277 = vadd.f32 %v87, %v276
    %v278 = vpop.f32.mrb[0].mxu0
    %v279 = vadd.f32 %v91, %v278
    %v280 = vpop.f32.mrb[0].mxu0
    %v281 = vadd.f32 %v87, %v280
    %v282 = vpop.f32.mrb[0].mxu0
    %v283 = vadd.f32 %v91, %v282
    %284 = vmatprep.mubr.bf16.mxu0 0
    %285 = vmatmul.mubr.bf16.gmra.mrb[0].mxu0 %v147
    %v286 = vpop.f32.mrb[0].mxu0
    %v287 = vadd.f32 %v87, %v286
    %v288 = vpop.f32.mrb[0].mxu0
    %v289 = vadd.f32 %v91, %v288
    %v290 = vpop.f32.mrb[0].mxu0
    %v291 = vadd.f32 %v87, %v290
    %v292 = vpop.f32.mrb[0].mxu0
    %v293 = vadd.f32 %v91, %v292
    %294 = vdwg.mxu0
    %295 = vst [vmem:[#allocation4] sm:$0xff] %v184
    %296 = vst [vmem:[#allocation4 + $0x8] sm:$0xff] %v186
    %297 = vst [vmem:[#allocation4 + $0x10] sm:$0xff] %v257
    %298 = vst [vmem:[#allocation4 + $0x18] sm:$0xff] %v259
    %299 = vst [vmem:[#allocation4 + $0x20] sm:$0xff] %v188
    %300 = vst [vmem:[#allocation4 + $0x28] sm:$0xff] %v190
    %301 = vst [vmem:[#allocation4 + $0x30] sm:$0xff] %v261
    %302 = vst [vmem:[#allocation4 + $0x38] sm:$0xff] %v263
    %303 = vst [vmem:[#allocation4 + $0x40] sm:$0xff] %v194
    %304 = vst [vmem:[#allocation4 + $0x48] sm:$0xff] %v196
    %305 = vst [vmem:[#allocation4 + $0x50] sm:$0xff] %v267
    %306 = vst [vmem:[#allocation4 + $0x58] sm:$0xff] %v269
    %307 = vst [vmem:[#allocation4 + $0x60] sm:$0xff] %v198
    %308 = vst [vmem:[#allocation4 + $0x68] sm:$0xff] %v200
    %309 = vst [vmem:[#allocation4 + $0x70] sm:$0xff] %v271
    %310 = vst [vmem:[#allocation4 + $0x78] sm:$0xff] %v273
    %311 = vst [vmem:[#allocation4 + $0x80] sm:$0xff] %v204
    %312 = vst [vmem:[#allocation4 + $0x88] sm:$0xff] %v206
    %313 = vst [vmem:[#allocation4 + $0x90] sm:$0xff] %v277
    %314 = vst [vmem:[#allocation4 + $0x98] sm:$0xff] %v279
    %315 = vst [vmem:[#allocation4 + $0xa0] sm:$0xff] %v208
    %316 = vst [vmem:[#allocation4 + $0xa8] sm:$0xff] %v210
    %317 = vst [vmem:[#allocation4 + $0xb0] sm:$0xff] %v281
    %318 = vst [vmem:[#allocation4 + $0xb8] sm:$0xff] %v283
    %319 = vst [vmem:[#allocation4 + $0xc0] sm:$0xff] %v214
    %320 = vst [vmem:[#allocation4 + $0xc8] sm:$0xff] %v216
    %321 = vst [vmem:[#allocation4 + $0xd0] sm:$0xff] %v287
    %322 = vst [vmem:[#allocation4 + $0xd8] sm:$0xff] %v289
    %323 = vst [vmem:[#allocation4 + $0xe0] sm:$0xff] %v218
    %324 = vst [vmem:[#allocation4 + $0xe8] sm:$0xff] %v220
    %325 = vst [vmem:[#allocation4 + $0xf0] sm:$0xff] %v291
    %326 = vst [vmem:[#allocation4 + $0xf8] sm:$0xff] %v293
    %v327 = vld [vmem:[%s1] sm:$0xff]
    %s328 = smul.u32 0, 8
    %v329 = vld [vmem:[#allocation2] sm:$0xff]
    %v330 = vld [vmem:[#allocation3] sm:$0xff]
    %s331 = smul.u32 0, 4
    %s332 = smul.addr %s331, 8
    %s333 = scalar_lea.vmem [#allocation4], %s332
    %v334 = vld [vmem:[%s333] sm:$0xff]
    %v335 = vld [vmem:[%s333 + $0x8] sm:$0xff]
    %v336 = vld [vmem:[%s333 + $0x10] sm:$0xff]
    %v337 = vld [vmem:[%s333 + $0x18] sm:$0xff]
    %v338 = vpack.c.bf16 %v329, %v329
    %v339 = vld [vmem:[#allocation5] sm:$0xff]
    %v340 = vld [vmem:[#allocation5 + $0x8] sm:$0xff]
    %v341 = vld [vmem:[#allocation5 + $0x10] sm:$0xff]
    %v342 = vld [vmem:[#allocation5 + $0x18] sm:$0xff]
    %v343 = vld [vmem:[#allocation5 + $0x20] sm:$0xff]
    %v344 = vld [vmem:[#allocation5 + $0x28] sm:$0xff]
    %v345 = vld [vmem:[#allocation5 + $0x30] sm:$0xff]
    %v346 = vld [vmem:[#allocation5 + $0x38] sm:$0xff]
    %v347 = vld [vmem:[#allocation5 + $0x40] sm:$0xff]
    %v348 = vld [vmem:[#allocation5 + $0x48] sm:$0xff]
    %v349 = vld [vmem:[#allocation5 + $0x50] sm:$0xff]
    %v350 = vld [vmem:[#allocation5 + $0x58] sm:$0xff]
    %v351 = vld [vmem:[#allocation5 + $0x60] sm:$0xff]
    %v352 = vld [vmem:[#allocation5 + $0x68] sm:$0xff]
    %v353 = vld [vmem:[#allocation5 + $0x70] sm:$0xff]
    %v354 = vld [vmem:[#allocation5 + $0x78] sm:$0xff]
    %v355 = vld [vmem:[#allocation5 + $0x80] sm:$0xff]
    %v356 = vld [vmem:[#allocation5 + $0x88] sm:$0xff]
    %v357 = vld [vmem:[#allocation5 + $0x90] sm:$0xff]
    %v358 = vld [vmem:[#allocation5 + $0x98] sm:$0xff]
    %v359 = vld [vmem:[#allocation5 + $0xa0] sm:$0xff]
    %v360 = vld [vmem:[#allocation5 + $0xa8] sm:$0xff]
    %v361 = vld [vmem:[#allocation5 + $0xb0] sm:$0xff]
    %v362 = vld [vmem:[#allocation5 + $0xb8] sm:$0xff]
    %v363 = vld [vmem:[#allocation5 + $0xc0] sm:$0xff]
    %v364 = vld [vmem:[#allocation5 + $0xc8] sm:$0xff]
    %v365 = vld [vmem:[#allocation5 + $0xd0] sm:$0xff]
    %v366 = vld [vmem:[#allocation5 + $0xd8] sm:$0xff]
    %v367 = vld [vmem:[#allocation5 + $0xe0] sm:$0xff]
    %v368 = vld [vmem:[#allocation5 + $0xe8] sm:$0xff]
    %v369 = vld [vmem:[#allocation5 + $0xf0] sm:$0xff]
    %v370 = vld [vmem:[#allocation5 + $0xf8] sm:$0xff]
    %v403 = vunpack.c.l.b16 %v339
    %v404 = vunpack.c.h.b16 %v339
    %v405 = vunpack.c.l.b16 %v340
    %v406 = vunpack.c.h.b16 %v340
    %v407 = vunpack.c.l.b16 %v341
    %v408 = vunpack.c.h.b16 %v341
    %v409 = vunpack.c.l.b16 %v342
    %v410 = vunpack.c.h.b16 %v342
    %v411 = vunpack.c.l.b16 %v343
    %v412 = vunpack.c.h.b16 %v343
    %v413 = vunpack.c.l.b16 %v344
    %v414 = vunpack.c.h.b16 %v344
    %v415 = vunpack.c.l.b16 %v345
    %v416 = vunpack.c.h.b16 %v345
    %v417 = vunpack.c.l.b16 %v346
    %v418 = vunpack.c.h.b16 %v346
    %v419 = vunpack.c.l.b16 %v347
    %v420 = vunpack.c.h.b16 %v347
    %v421 = vunpack.c.l.b16 %v348
    %v422 = vunpack.c.h.b16 %v348
    %v423 = vunpack.c.l.b16 %v349
    %v424 = vunpack.c.h.b16 %v349
    %v425 = vunpack.c.l.b16 %v350
    %v426 = vunpack.c.h.b16 %v350
    %v427 = vunpack.c.l.b16 %v351
    %v428 = vunpack.c.h.b16 %v351
    %v429 = vunpack.c.l.b16 %v352
    %v430 = vunpack.c.h.b16 %v352
    %v431 = vunpack.c.l.b16 %v353
    %v432 = vunpack.c.h.b16 %v353
    %v433 = vunpack.c.l.b16 %v354
    %v434 = vunpack.c.h.b16 %v354
    %v435 = vunpack.c.l.b16 %v355
    %v436 = vunpack.c.h.b16 %v355
    %v437 = vunpack.c.l.b16 %v356
    %v438 = vunpack.c.h.b16 %v356
    %v439 = vunpack.c.l.b16 %v357
    %v440 = vunpack.c.h.b16 %v357
    %v441 = vunpack.c.l.b16 %v358
    %v442 = vunpack.c.h.b16 %v358
    %v443 = vunpack.c.l.b16 %v359
    %v444 = vunpack.c.h.b16 %v359
    %v445 = vunpack.c.l.b16 %v360
    %v446 = vunpack.c.h.b16 %v360
    %v447 = vunpack.c.l.b16 %v361
    %v448 = vunpack.c.h.b16 %v361
    %v449 = vunpack.c.l.b16 %v362
    %v450 = vunpack.c.h.b16 %v362
    %v451 = vunpack.c.l.b16 %v363
    %v452 = vunpack.c.h.b16 %v363
    %v453 = vunpack.c.l.b16 %v364
    %v454 = vunpack.c.h.b16 %v364
    %v455 = vunpack.c.l.b16 %v365
    %v456 = vunpack.c.h.b16 %v365
    %v457 = vunpack.c.l.b16 %v366
    %v458 = vunpack.c.h.b16 %v366
    %v459 = vunpack.c.l.b16 %v367
    %v460 = vunpack.c.h.b16 %v367
    %v461 = vunpack.c.l.b16 %v368
    %v462 = vunpack.c.h.b16 %v368
    %v463 = vunpack.c.l.b16 %v369
    %v464 = vunpack.c.h.b16 %v369
    %v465 = vunpack.c.l.b16 %v370
    %v466 = vunpack.c.h.b16 %v370
    %v467 = vpack.c.b16 %v407, %v403
    %v468 = vpack.c.b16 %v408, %v404
    %v469 = vpack.c.b16 %v409, %v405
    %v470 = vpack.c.b16 %v410, %v406
    %v471 = vpack.c.b16 %v415, %v411
    %v472 = vpack.c.b16 %v416, %v412
    %v473 = vpack.c.b16 %v417, %v413
    %v474 = vpack.c.b16 %v418, %v414
    %v475 = vpack.c.b16 %v423, %v419
    %v476 = vpack.c.b16 %v424, %v420
    %v477 = vpack.c.b16 %v425, %v421
    %v478 = vpack.c.b16 %v426, %v422
    %v479 = vpack.c.b16 %v431, %v427
    %v480 = vpack.c.b16 %v432, %v428
    %v481 = vpack.c.b16 %v433, %v429
    %v482 = vpack.c.b16 %v434, %v430
    %v483 = vpack.c.b16 %v439, %v435
    %v484 = vpack.c.b16 %v440, %v436
    %v485 = vpack.c.b16 %v441, %v437
    %v486 = vpack.c.b16 %v442, %v438
    %v487 = vpack.c.b16 %v447, %v443
    %v488 = vpack.c.b16 %v448, %v444
    %v489 = vpack.c.b16 %v449, %v445
    %v490 = vpack.c.b16 %v450, %v446
    %v491 = vpack.c.b16 %v455, %v451
    %v492 = vpack.c.b16 %v456, %v452
    %v493 = vpack.c.b16 %v457, %v453
    %v494 = vpack.c.b16 %v458, %v454
    %v495 = vpack.c.b16 %v463, %v459
    %v496 = vpack.c.b16 %v464, %v460
    %v497 = vpack.c.b16 %v465, %v461
    %v498 = vpack.c.b16 %v466, %v462
    %531 = vmatprep.subr.bf16.mxu0 %v468
    %532 = vmatpush1.bf16.msra.mxu0 %v467
    %533 = vmatprep.subr.bf16.mxu0 %v472
    %534 = vmatpush1.bf16.msra.mxu0 %v471
    %535 = vmatprep.subr.bf16.mxu0 %v476
    %536 = vmatpush1.bf16.msra.mxu0 %v475
    %537 = vmatprep.subr.bf16.mxu0 %v480
    %538 = vmatpush1.bf16.msra.mxu0 %v479
    %539 = vmatprep.subr.bf16.mxu0 %v484
    %540 = vmatpush1.bf16.msra.mxu0 %v483
    %541 = vmatprep.subr.bf16.mxu0 %v488
    %542 = vmatpush1.bf16.msra.mxu0 %v487
    %543 = vmatprep.subr.bf16.mxu0 %v492
    %544 = vmatpush1.bf16.msra.mxu0 %v491
    %545 = vmatprep.subr.bf16.mxu0 %v496
    %546 = vmatpush1.bf16.msra.mxu0 %v495
    %547 = vmatprep.subr.bf16.mxu0 0
    %548 = vmatpush1.bf16.msra.mxu0 0
    %549 = vmatprep.subr.bf16.mxu0 0
    %550 = vmatpush1.bf16.msra.mxu0 0
    %551 = vmatprep.subr.bf16.mxu0 0
    %552 = vmatpush1.bf16.msra.mxu0 0
    %553 = vmatprep.subr.bf16.mxu0 0
    %554 = vmatpush1.bf16.msra.mxu0 0
    %555 = vmatprep.subr.bf16.mxu0 0
    %556 = vmatpush1.bf16.msra.mxu0 0
    %557 = vmatprep.subr.bf16.mxu0 0
    %558 = vmatpush1.bf16.msra.mxu0 0
    %559 = vmatprep.subr.bf16.mxu0 0
    %560 = vmatpush1.bf16.msra.mxu0 0
    %561 = vmatprep.subr.bf16.mxu0 0
    %562 = vmatpush1.bf16.msra.mxu0 0
    %563 = vmatprep.mubr.bf16.mxu0 0
    %564 = vmatmul.mubr.bf16.gmra.mrb[0].mxu0 %v338
    %v565 = vpop.f32.mrb[0].mxu0
    %v566 = vadd.f32 0.0, %v565
    %v567 = vpop.f32.mrb[0].mxu0
    %v568 = vadd.f32 0.0, %v567
    %v569 = vpop.f32.mrb[0].mxu0
    %v570 = vpop.f32.mrb[0].mxu0
    %571 = vdwg.mxu0
    %572 = vmatprep.subr.bf16.mxu0 %v470
    %573 = vmatpush1.bf16.msra.mxu0 %v469
    %574 = vmatprep.subr.bf16.mxu0 %v474
    %575 = vmatpush1.bf16.msra.mxu0 %v473
    %576 = vmatprep.subr.bf16.mxu0 %v478
    %577 = vmatpush1.bf16.msra.mxu0 %v477
    %578 = vmatprep.subr.bf16.mxu0 %v482
    %579 = vmatpush1.bf16.msra.mxu0 %v481
    %580 = vmatprep.subr.bf16.mxu0 %v486
    %581 = vmatpush1.bf16.msra.mxu0 %v485
    %582 = vmatprep.subr.bf16.mxu0 %v490
    %583 = vmatpush1.bf16.msra.mxu0 %v489
    %584 = vmatprep.subr.bf16.mxu0 %v494
    %585 = vmatpush1.bf16.msra.mxu0 %v493
    %586 = vmatprep.subr.bf16.mxu0 %v498
    %587 = vmatpush1.bf16.msra.mxu0 %v497
    %588 = vmatprep.subr.bf16.mxu0 0
    %589 = vmatpush1.bf16.msra.mxu0 0
    %590 = vmatprep.subr.bf16.mxu0 0
    %591 = vmatpush1.bf16.msra.mxu0 0
    %592 = vmatprep.subr.bf16.mxu0 0
    %593 = vmatpush1.bf16.msra.mxu0 0
    %594 = vmatprep.subr.bf16.mxu0 0
    %595 = vmatpush1.bf16.msra.mxu0 0
    %596 = vmatprep.subr.bf16.mxu0 0
    %597 = vmatpush1.bf16.msra.mxu0 0
    %598 = vmatprep.subr.bf16.mxu0 0
    %599 = vmatpush1.bf16.msra.mxu0 0
    %600 = vmatprep.subr.bf16.mxu0 0
    %601 = vmatpush1.bf16.msra.mxu0 0
    %602 = vmatprep.subr.bf16.mxu0 0
    %603 = vmatpush1.bf16.msra.mxu0 0
    %604 = vmatprep.mubr.bf16.mxu0 0
    %605 = vmatmul.mubr.bf16.gmra.mrb[0].mxu0 %v338
    %v606 = vpop.f32.mrb[0].mxu0
    %v607 = vadd.f32 0.0, %v606
    %v608 = vpop.f32.mrb[0].mxu0
    %v609 = vadd.f32 0.0, %v608
    %v610 = vpop.f32.mrb[0].mxu0
    %v611 = vpop.f32.mrb[0].mxu0
    %612 = vdwg.mxu0
    %v613 = vadd.f32 %v334, %v566
    %v614 = vadd.f32 %v335, %v568
    %v615 = vadd.f32 %v336, %v607
    %v616 = vadd.f32 %v337, %v609
    %v617 = vxor.u32 %v613, 2147483648
    %v618 = vmul.f32 %v617, 1.442695
    %v619 = vpow.pop %v618
    %v620 = vadd.f32 %v619, 1.0
    %v621 = vrcp.pop %v620
    %v622 = vmul.f32 1.0, %v621
    %v623 = vxor.u32 %v614, 2147483648
    %v624 = vmul.f32 %v623, 1.442695
    %v625 = vpow.pop %v624
    %v626 = vadd.f32 %v625, 1.0
    %v627 = vrcp.pop %v626
    %v628 = vmul.f32 1.0, %v627
    %v629 = vtanh.pop %v615
    %v630 = vxor.u32 %v616, 2147483648
    %v631 = vmul.f32 %v630, 1.442695
    %v632 = vpow.pop %v631
    %v633 = vadd.f32 %v632, 1.0
    %v634 = vrcp.pop %v633
    %v635 = vmul.f32 1.0, %v634
    %v636 = vmul.f32 %v628, %v330
    %v637 = vmul.f32 %v622, %v629
    %v638 = vadd.f32 %v636, %v637
    %v639 = vtanh.pop %v638
    %v640 = vmul.f32 %v635, %v639
    %v641 = vstv %s328
    %vm642 = vcmp.lt.s32.totalorder %v641, %v327
    %v643 = vsel %vm642, 1, 0
    %644 = vset.pattern.permute.xlu0 0
    %645 = vperm.xlu0 %644, %v643
    %v646 = vpop.permute.xlu0 %645
    %vm647 = vcmp.eq.s32.totalorder %v646, 1
    %v648 = vsel %vm647, %v640, %v329
    %v649 = vsel %vm647, %v638, %v330
    %s650 = smul.u32 1, 4
    %s651 = smul.addr %s650, 8
    %s652 = scalar_lea.vmem [#allocation4], %s651
    %v653 = vld [vmem:[%s652] sm:$0xff]
    %v654 = vld [vmem:[%s652 + $0x8] sm:$0xff]
    %v655 = vld [vmem:[%s652 + $0x10] sm:$0xff]
    %v656 = vld [vmem:[%s652 + $0x18] sm:$0xff]
    %v657 = vpack.c.bf16 %v648, %v648
    %658 = vmatprep.subr.bf16.mxu0 %v468
    %659 = vmatpush1.bf16.msra.mxu0 %v467
    %660 = vmatprep.subr.bf16.mxu0 %v472
    %661 = vmatpush1.bf16.msra.mxu0 %v471
    %662 = vmatprep.subr.bf16.mxu0 %v476
    %663 = vmatpush1.bf16.msra.mxu0 %v475
    %664 = vmatprep.subr.bf16.mxu0 %v480
    %665 = vmatpush1.bf16.msra.mxu0 %v479
    %666 = vmatprep.subr.bf16.mxu0 %v484
    %667 = vmatpush1.bf16.msra.mxu0 %v483
    %668 = vmatprep.subr.bf16.mxu0 %v488
    %669 = vmatpush1.bf16.msra.mxu0 %v487
    %670 = vmatprep.subr.bf16.mxu0 %v492
    %671 = vmatpush1.bf16.msra.mxu0 %v491
    %672 = vmatprep.subr.bf16.mxu0 %v496
    %673 = vmatpush1.bf16.msra.mxu0 %v495
    %674 = vmatprep.subr.bf16.mxu0 0
    %675 = vmatpush1.bf16.msra.mxu0 0
    %676 = vmatprep.subr.bf16.mxu0 0
    %677 = vmatpush1.bf16.msra.mxu0 0
    %678 = vmatprep.subr.bf16.mxu0 0
    %679 = vmatpush1.bf16.msra.mxu0 0
    %680 = vmatprep.subr.bf16.mxu0 0
    %681 = vmatpush1.bf16.msra.mxu0 0
    %682 = vmatprep.subr.bf16.mxu0 0
    %683 = vmatpush1.bf16.msra.mxu0 0
    %684 = vmatprep.subr.bf16.mxu0 0
    %685 = vmatpush1.bf16.msra.mxu0 0
    %686 = vmatprep.subr.bf16.mxu0 0
    %687 = vmatpush1.bf16.msra.mxu0 0
    %688 = vmatprep.subr.bf16.mxu0 0
    %689 = vmatpush1.bf16.msra.mxu0 0
    %690 = vmatprep.mubr.bf16.mxu0 0
    %691 = vmatmul.mubr.bf16.gmra.mrb[0].mxu0 %v657
    %v692 = vpop.f32.mrb[0].mxu0
    %v693 = vadd.f32 0.0, %v692
    %v694 = vpop.f32.mrb[0].mxu0
    %v695 = vadd.f32 0.0, %v694
    %v696 = vpop.f32.mrb[0].mxu0
    %v697 = vpop.f32.mrb[0].mxu0
    %698 = vdwg.mxu0
    %699 = vmatprep.subr.bf16.mxu0 %v470
    %700 = vmatpush1.bf16.msra.mxu0 %v469
    %701 = vmatprep.subr.bf16.mxu0 %v474
    %702 = vmatpush1.bf16.msra.mxu0 %v473
    %703 = vmatprep.subr.bf16.mxu0 %v478
    %704 = vmatpush1.bf16.msra.mxu0 %v477
    %705 = vmatprep.subr.bf16.mxu0 %v482
    %706 = vmatpush1.bf16.msra.mxu0 %v481
    %707 = vmatprep.subr.bf16.mxu0 %v486
    %708 = vmatpush1.bf16.msra.mxu0 %v485
    %709 = vmatprep.subr.bf16.mxu0 %v490
    %710 = vmatpush1.bf16.msra.mxu0 %v489
    %711 = vmatprep.subr.bf16.mxu0 %v494
    %712 = vmatpush1.bf16.msra.mxu0 %v493
    %713 = vmatprep.subr.bf16.mxu0 %v498
    %714 = vmatpush1.bf16.msra.mxu0 %v497
    %715 = vmatprep.subr.bf16.mxu0 0
    %716 = vmatpush1.bf16.msra.mxu0 0
    %717 = vmatprep.subr.bf16.mxu0 0
    %718 = vmatpush1.bf16.msra.mxu0 0
    %719 = vmatprep.subr.bf16.mxu0 0
    %720 = vmatpush1.bf16.msra.mxu0 0
    %721 = vmatprep.subr.bf16.mxu0 0
    %722 = vmatpush1.bf16.msra.mxu0 0
    %723 = vmatprep.subr.bf16.mxu0 0
    %724 = vmatpush1.bf16.msra.mxu0 0
    %725 = vmatprep.subr.bf16.mxu0 0
    %726 = vmatpush1.bf16.msra.mxu0 0
    %727 = vmatprep.subr.bf16.mxu0 0
    %728 = vmatpush1.bf16.msra.mxu0 0
    %729 = vmatprep.subr.bf16.mxu0 0
    %730 = vmatpush1.bf16.msra.mxu0 0
    %731 = vmatprep.mubr.bf16.mxu0 0
    %732 = vmatmul.mubr.bf16.gmra.mrb[0].mxu0 %v657
    %v733 = vpop.f32.mrb[0].mxu0
    %v734 = vadd.f32 0.0, %v733
    %v735 = vpop.f32.mrb[0].mxu0
    %v736 = vadd.f32 0.0, %v735
    %v737 = vpop.f32.mrb[0].mxu0
    %v738 = vpop.f32.mrb[0].mxu0
    %739 = vdwg.mxu0
    %v740 = vadd.f32 %v653, %v693
    %v741 = vadd.f32 %v654, %v695
    %v742 = vadd.f32 %v655, %v734
    %v743 = vadd.f32 %v656, %v736
    %v744 = vxor.u32 %v740, 2147483648
    %v745 = vmul.f32 %v744, 1.442695
    %v746 = vpow.pop %v745
    %v747 = vadd.f32 %v746, 1.0
    %v748 = vrcp.pop %v747
    %v749 = vmul.f32 1.0, %v748
    %v750 = vxor.u32 %v741, 2147483648
    %v751 = vmul.f32 %v750, 1.442695
    %v752 = vpow.pop %v751
    %v753 = vadd.f32 %v752, 1.0
    %v754 = vrcp.pop %v753
    %v755 = vmul.f32 1.0, %v754
    %v756 = vtanh.pop %v742
    %v757 = vxor.u32 %v743, 2147483648
    %v758 = vmul.f32 %v757, 1.442695
    %v759 = vpow.pop %v758
    %v760 = vadd.f32 %v759, 1.0
    %v761 = vrcp.pop %v760
    %v762 = vmul.f32 1.0, %v761
    %v763 = vmul.f32 %v755, %v649
    %v764 = vmul.f32 %v749, %v756
    %v765 = vadd.f32 %v763, %v764
    %v766 = vtanh.pop %v765
    %v767 = vmul.f32 %v762, %v766
    %s768 = sadd.s32 %s328, 1
    %v769 = vstv %s768
    %vm770 = vcmp.lt.s32.totalorder %v769, %v327
    %v771 = vsel %vm770, 1, 0
    %772 = vset.pattern.permute.xlu0 0
    %773 = vperm.xlu0 %772, %v771
    %v774 = vpop.permute.xlu0 %773
    %vm775 = vcmp.eq.s32.totalorder %v774, 1
    %v776 = vsel %vm775, %v767, %v648
    %v777 = vsel %vm775, %v765, %v649
    %s778 = smul.u32 2, 4
    %s779 = smul.addr %s778, 8
    %s780 = scalar_lea.vmem [#allocation4], %s779
    %v781 = vld [vmem:[%s780] sm:$0xff]
    %v782 = vld [vmem:[%s780 + $0x8] sm:$0xff]
    %v783 = vld [vmem:[%s780 + $0x10] sm:$0xff]
    %v784 = vld [vmem:[%s780 + $0x18] sm:$0xff]
    %v785 = vpack.c.bf16 %v776, %v776
    %786 = vmatprep.subr.bf16.mxu0 %v468
    %787 = vmatpush1.bf16.msra.mxu0 %v467
    %788 = vmatprep.subr.bf16.mxu0 %v472
    %789 = vmatpush1.bf16.msra.mxu0 %v471
    %790 = vmatprep.subr.bf16.mxu0 %v476
    %791 = vmatpush1.bf16.msra.mxu0 %v475
    %792 = vmatprep.subr.bf16.mxu0 %v480
    %793 = vmatpush1.bf16.msra.mxu0 %v479
    %794 = vmatprep.subr.bf16.mxu0 %v484
    %795 = vmatpush1.bf16.msra.mxu0 %v483
    %796 = vmatprep.subr.bf16.mxu0 %v488
    %797 = vmatpush1.bf16.msra.mxu0 %v487
    %798 = vmatprep.subr.bf16.mxu0 %v492
    %799 = vmatpush1.bf16.msra.mxu0 %v491
    %800 = vmatprep.subr.bf16.mxu0 %v496
    %801 = vmatpush1.bf16.msra.mxu0 %v495
    %802 = vmatprep.subr.bf16.mxu0 0
    %803 = vmatpush1.bf16.msra.mxu0 0
    %804 = vmatprep.subr.bf16.mxu0 0
    %805 = vmatpush1.bf16.msra.mxu0 0
    %806 = vmatprep.subr.bf16.mxu0 0
    %807 = vmatpush1.bf16.msra.mxu0 0
    %808 = vmatprep.subr.bf16.mxu0 0
    %809 = vmatpush1.bf16.msra.mxu0 0
    %810 = vmatprep.subr.bf16.mxu0 0
    %811 = vmatpush1.bf16.msra.mxu0 0
    %812 = vmatprep.subr.bf16.mxu0 0
    %813 = vmatpush1.bf16.msra.mxu0 0
    %814 = vmatprep.subr.bf16.mxu0 0
    %815 = vmatpush1.bf16.msra.mxu0 0
    %816 = vmatprep.subr.bf16.mxu0 0
    %817 = vmatpush1.bf16.msra.mxu0 0
    %818 = vmatprep.mubr.bf16.mxu0 0
    %819 = vmatmul.mubr.bf16.gmra.mrb[0].mxu0 %v785
    %v820 = vpop.f32.mrb[0].mxu0
    %v821 = vadd.f32 0.0, %v820
    %v822 = vpop.f32.mrb[0].mxu0
    %v823 = vadd.f32 0.0, %v822
    %v824 = vpop.f32.mrb[0].mxu0
    %v825 = vpop.f32.mrb[0].mxu0
    %826 = vdwg.mxu0
    %827 = vmatprep.subr.bf16.mxu0 %v470
    %828 = vmatpush1.bf16.msra.mxu0 %v469
    %829 = vmatprep.subr.bf16.mxu0 %v474
    %830 = vmatpush1.bf16.msra.mxu0 %v473
    %831 = vmatprep.subr.bf16.mxu0 %v478
    %832 = vmatpush1.bf16.msra.mxu0 %v477
    %833 = vmatprep.subr.bf16.mxu0 %v482
    %834 = vmatpush1.bf16.msra.mxu0 %v481
    %835 = vmatprep.subr.bf16.mxu0 %v486
    %836 = vmatpush1.bf16.msra.mxu0 %v485
    %837 = vmatprep.subr.bf16.mxu0 %v490
    %838 = vmatpush1.bf16.msra.mxu0 %v489
    %839 = vmatprep.subr.bf16.mxu0 %v494
    %840 = vmatpush1.bf16.msra.mxu0 %v493
    %841 = vmatprep.subr.bf16.mxu0 %v498
    %842 = vmatpush1.bf16.msra.mxu0 %v497
    %843 = vmatprep.subr.bf16.mxu0 0
    %844 = vmatpush1.bf16.msra.mxu0 0
    %845 = vmatprep.subr.bf16.mxu0 0
    %846 = vmatpush1.bf16.msra.mxu0 0
    %847 = vmatprep.subr.bf16.mxu0 0
    %848 = vmatpush1.bf16.msra.mxu0 0
    %849 = vmatprep.subr.bf16.mxu0 0
    %850 = vmatpush1.bf16.msra.mxu0 0
    %851 = vmatprep.subr.bf16.mxu0 0
    %852 = vmatpush1.bf16.msra.mxu0 0
    %853 = vmatprep.subr.bf16.mxu0 0
    %854 = vmatpush1.bf16.msra.mxu0 0
    %855 = vmatprep.subr.bf16.mxu0 0
    %856 = vmatpush1.bf16.msra.mxu0 0
    %857 = vmatprep.subr.bf16.mxu0 0
    %858 = vmatpush1.bf16.msra.mxu0 0
    %859 = vmatprep.mubr.bf16.mxu0 0
    %860 = vmatmul.mubr.bf16.gmra.mrb[0].mxu0 %v785
    %v861 = vpop.f32.mrb[0].mxu0
    %v862 = vadd.f32 0.0, %v861
    %v863 = vpop.f32.mrb[0].mxu0
    %v864 = vadd.f32 0.0, %v863
    %v865 = vpop.f32.mrb[0].mxu0
    %v866 = vpop.f32.mrb[0].mxu0
    %867 = vdwg.mxu0
    %v868 = vadd.f32 %v781, %v821
    %v869 = vadd.f32 %v782, %v823
    %v870 = vadd.f32 %v783, %v862
    %v871 = vadd.f32 %v784, %v864
    %v872 = vxor.u32 %v868, 2147483648
    %v873 = vmul.f32 %v872, 1.442695
    %v874 = vpow.pop %v873
    %v875 = vadd.f32 %v874, 1.0
    %v876 = vrcp.pop %v875
    %v877 = vmul.f32 1.0, %v876
    %v878 = vxor.u32 %v869, 2147483648
    %v879 = vmul.f32 %v878, 1.442695
    %v880 = vpow.pop %v879
    %v881 = vadd.f32 %v880, 1.0
    %v882 = vrcp.pop %v881
    %v883 = vmul.f32 1.0, %v882
    %v884 = vtanh.pop %v870
    %v885 = vxor.u32 %v871, 2147483648
    %v886 = vmul.f32 %v885, 1.442695
    %v887 = vpow.pop %v886
    %v888 = vadd.f32 %v887, 1.0
    %v889 = vrcp.pop %v888
    %v890 = vmul.f32 1.0, %v889
    %v891 = vmul.f32 %v883, %v777
    %v892 = vmul.f32 %v877, %v884
    %v893 = vadd.f32 %v891, %v892
    %v894 = vtanh.pop %v893
    %v895 = vmul.f32 %v890, %v894
    %s896 = sadd.s32 %s328, 2
    %v897 = vstv %s896
    %vm898 = vcmp.lt.s32.totalorder %v897, %v327
    %v899 = vsel %vm898, 1, 0
    %900 = vset.pattern.permute.xlu0 0
    %901 = vperm.xlu0 %900, %v899
    %v902 = vpop.permute.xlu0 %901
    %vm903 = vcmp.eq.s32.totalorder %v902, 1
    %v904 = vsel %vm903, %v895, %v776
    %v905 = vsel %vm903, %v893, %v777
    %s906 = smul.u32 3, 4
    %s907 = smul.addr %s906, 8
    %s908 = scalar_lea.vmem [#allocation4], %s907
    %v909 = vld [vmem:[%s908] sm:$0xff]
    %v910 = vld [vmem:[%s908 + $0x8] sm:$0xff]
    %v911 = vld [vmem:[%s908 + $0x10] sm:$0xff]
    %v912 = vld [vmem:[%s908 + $0x18] sm:$0xff]
    %v913 = vpack.c.bf16 %v904, %v904
    %914 = vmatprep.subr.bf16.mxu0 %v468
    %915 = vmatpush1.bf16.msra.mxu0 %v467
    %916 = vmatprep.subr.bf16.mxu0 %v472
    %917 = vmatpush1.bf16.msra.mxu0 %v471
    %918 = vmatprep.subr.bf16.mxu0 %v476
    %919 = vmatpush1.bf16.msra.mxu0 %v475
    %920 = vmatprep.subr.bf16.mxu0 %v480
    %921 = vmatpush1.bf16.msra.mxu0 %v479
    %922 = vmatprep.subr.bf16.mxu0 %v484
    %923 = vmatpush1.bf16.msra.mxu0 %v483
    %924 = vmatprep.subr.bf16.mxu0 %v488
    %925 = vmatpush1.bf16.msra.mxu0 %v487
    %926 = vmatprep.subr.bf16.mxu0 %v492
    %927 = vmatpush1.bf16.msra.mxu0 %v491
    %928 = vmatprep.subr.bf16.mxu0 %v496
    %929 = vmatpush1.bf16.msra.mxu0 %v495
    %930 = vmatprep.subr.bf16.mxu0 0
    %931 = vmatpush1.bf16.msra.mxu0 0
    %932 = vmatprep.subr.bf16.mxu0 0
    %933 = vmatpush1.bf16.msra.mxu0 0
    %934 = vmatprep.subr.bf16.mxu0 0
    %935 = vmatpush1.bf16.msra.mxu0 0
    %936 = vmatprep.subr.bf16.mxu0 0
    %937 = vmatpush1.bf16.msra.mxu0 0
    %938 = vmatprep.subr.bf16.mxu0 0
    %939 = vmatpush1.bf16.msra.mxu0 0
    %940 = vmatprep.subr.bf16.mxu0 0
    %941 = vmatpush1.bf16.msra.mxu0 0
    %942 = vmatprep.subr.bf16.mxu0 0
    %943 = vmatpush1.bf16.msra.mxu0 0
    %944 = vmatprep.subr.bf16.mxu0 0
    %945 = vmatpush1.bf16.msra.mxu0 0
    %946 = vmatprep.mubr.bf16.mxu0 0
    %947 = vmatmul.mubr.bf16.gmra.mrb[0].mxu0 %v913
    %v948 = vpop.f32.mrb[0].mxu0
    %v949 = vadd.f32 0.0, %v948
    %v950 = vpop.f32.mrb[0].mxu0
    %v951 = vadd.f32 0.0, %v950
    %v952 = vpop.f32.mrb[0].mxu0
    %v953 = vpop.f32.mrb[0].mxu0
    %954 = vdwg.mxu0
    %955 = vmatprep.subr.bf16.mxu0 %v470
    %956 = vmatpush1.bf16.msra.mxu0 %v469
    %957 = vmatprep.subr.bf16.mxu0 %v474
    %958 = vmatpush1.bf16.msra.mxu0 %v473
    %959 = vmatprep.subr.bf16.mxu0 %v478
    %960 = vmatpush1.bf16.msra.mxu0 %v477
    %961 = vmatprep.subr.bf16.mxu0 %v482
    %962 = vmatpush1.bf16.msra.mxu0 %v481
    %963 = vmatprep.subr.bf16.mxu0 %v486
    %964 = vmatpush1.bf16.msra.mxu0 %v485
    %965 = vmatprep.subr.bf16.mxu0 %v490
    %966 = vmatpush1.bf16.msra.mxu0 %v489
    %967 = vmatprep.subr.bf16.mxu0 %v494
    %968 = vmatpush1.bf16.msra.mxu0 %v493
    %969 = vmatprep.subr.bf16.mxu0 %v498
    %970 = vmatpush1.bf16.msra.mxu0 %v497
    %971 = vmatprep.subr.bf16.mxu0 0
    %972 = vmatpush1.bf16.msra.mxu0 0
    %973 = vmatprep.subr.bf16.mxu0 0
    %974 = vmatpush1.bf16.msra.mxu0 0
    %975 = vmatprep.subr.bf16.mxu0 0
    %976 = vmatpush1.bf16.msra.mxu0 0
    %977 = vmatprep.subr.bf16.mxu0 0
    %978 = vmatpush1.bf16.msra.mxu0 0
    %979 = vmatprep.subr.bf16.mxu0 0
    %980 = vmatpush1.bf16.msra.mxu0 0
    %981 = vmatprep.subr.bf16.mxu0 0
    %982 = vmatpush1.bf16.msra.mxu0 0
    %983 = vmatprep.subr.bf16.mxu0 0
    %984 = vmatpush1.bf16.msra.mxu0 0
    %985 = vmatprep.subr.bf16.mxu0 0
    %986 = vmatpush1.bf16.msra.mxu0 0
    %987 = vmatprep.mubr.bf16.mxu0 0
    %988 = vmatmul.mubr.bf16.gmra.mrb[0].mxu0 %v913
    %v989 = vpop.f32.mrb[0].mxu0
    %v990 = vadd.f32 0.0, %v989
    %v991 = vpop.f32.mrb[0].mxu0
    %v992 = vadd.f32 0.0, %v991
    %v993 = vpop.f32.mrb[0].mxu0
    %v994 = vpop.f32.mrb[0].mxu0
    %995 = vdwg.mxu0
    %v996 = vadd.f32 %v909, %v949
    %v997 = vadd.f32 %v910, %v951
    %v998 = vadd.f32 %v911, %v990
    %v999 = vadd.f32 %v912, %v992
    %v1000 = vxor.u32 %v996, 2147483648
    %v1001 = vmul.f32 %v1000, 1.442695
    %v1002 = vpow.pop %v1001
    %v1003 = vadd.f32 %v1002, 1.0
    %v1004 = vrcp.pop %v1003
    %v1005 = vmul.f32 1.0, %v1004
    %v1006 = vxor.u32 %v997, 2147483648
    %v1007 = vmul.f32 %v1006, 1.442695
    %v1008 = vpow.pop %v1007
    %v1009 = vadd.f32 %v1008, 1.0
    %v1010 = vrcp.pop %v1009
    %v1011 = vmul.f32 1.0, %v1010
    %v1012 = vtanh.pop %v998
    %v1013 = vxor.u32 %v999, 2147483648
    %v1014 = vmul.f32 %v1013, 1.442695
    %v1015 = vpow.pop %v1014
    %v1016 = vadd.f32 %v1015, 1.0
    %v1017 = vrcp.pop %v1016
    %v1018 = vmul.f32 1.0, %v1017
    %v1019 = vmul.f32 %v1011, %v905
    %v1020 = vmul.f32 %v1005, %v1012
    %v1021 = vadd.f32 %v1019, %v1020
    %v1022 = vtanh.pop %v1021
    %v1023 = vmul.f32 %v1018, %v1022
    %s1024 = sadd.s32 %s328, 3
    %v1025 = vstv %s1024
    %vm1026 = vcmp.lt.s32.totalorder %v1025, %v327
    %v1027 = vsel %vm1026, 1, 0
    %1028 = vset.pattern.permute.xlu0 0
    %1029 = vperm.xlu0 %1028, %v1027
    %v1030 = vpop.permute.xlu0 %1029
    %vm1031 = vcmp.eq.s32.totalorder %v1030, 1
    %v1032 = vsel %vm1031, %v1023, %v904
    %v1033 = vsel %vm1031, %v1021, %v905
    %s1034 = smul.u32 4, 4
    %s1035 = smul.addr %s1034, 8
    %s1036 = scalar_lea.vmem [#allocation4], %s1035
    %v1037 = vld [vmem:[%s1036] sm:$0xff]
    %v1038 = vld [vmem:[%s1036 + $0x8] sm:$0xff]
    %v1039 = vld [vmem:[%s1036 + $0x10] sm:$0xff]
    %v1040 = vld [vmem:[%s1036 + $0x18] sm:$0xff]
    %v1041 = vpack.c.bf16 %v1032, %v1032
    %1042 = vmatprep.subr.bf16.mxu0 %v468
    %1043 = vmatpush1.bf16.msra.mxu0 %v467
    %1044 = vmatprep.subr.bf16.mxu0 %v472
    %1045 = vmatpush1.bf16.msra.mxu0 %v471
    %1046 = vmatprep.subr.bf16.mxu0 %v476
    %1047 = vmatpush1.bf16.msra.mxu0 %v475
    %1048 = vmatprep.subr.bf16.mxu0 %v480
    %1049 = vmatpush1.bf16.msra.mxu0 %v479
    %1050 = vmatprep.subr.bf16.mxu0 %v484
    %1051 = vmatpush1.bf16.msra.mxu0 %v483
    %1052 = vmatprep.subr.bf16.mxu0 %v488
    %1053 = vmatpush1.bf16.msra.mxu0 %v487
    %1054 = vmatprep.subr.bf16.mxu0 %v492
    %1055 = vmatpush1.bf16.msra.mxu0 %v491
    %1056 = vmatprep.subr.bf16.mxu0 %v496
    %1057 = vmatpush1.bf16.msra.mxu0 %v495
    %1058 = vmatprep.subr.bf16.mxu0 0
    %1059 = vmatpush1.bf16.msra.mxu0 0
    %1060 = vmatprep.subr.bf16.mxu0 0
    %1061 = vmatpush1.bf16.msra.mxu0 0
    %1062 = vmatprep.subr.bf16.mxu0 0
    %1063 = vmatpush1.bf16.msra.mxu0 0
    %1064 = vmatprep.subr.bf16.mxu0 0
    %1065 = vmatpush1.bf16.msra.mxu0 0
    %1066 = vmatprep.subr.bf16.mxu0 0
    %1067 = vmatpush1.bf16.msra.mxu0 0
    %1068 = vmatprep.subr.bf16.mxu0 0
    %1069 = vmatpush1.bf16.msra.mxu0 0
    %1070 = vmatprep.subr.bf16.mxu0 0
    %1071 = vmatpush1.bf16.msra.mxu0 0
    %1072 = vmatprep.subr.bf16.mxu0 0
    %1073 = vmatpush1.bf16.msra.mxu0 0
    %1074 = vmatprep.mubr.bf16.mxu0 0
    %1075 = vmatmul.mubr.bf16.gmra.mrb[0].mxu0 %v1041
    %v1076 = vpop.f32.mrb[0].mxu0
    %v1077 = vadd.f32 0.0, %v1076
    %v1078 = vpop.f32.mrb[0].mxu0
    %v1079 = vadd.f32 0.0, %v1078
    %v1080 = vpop.f32.mrb[0].mxu0
    %v1081 = vpop.f32.mrb[0].mxu0
    %1082 = vdwg.mxu0
    %1083 = vmatprep.subr.bf16.mxu0 %v470
    %1084 = vmatpush1.bf16.msra.mxu0 %v469
    %1085 = vmatprep.subr.bf16.mxu0 %v474
    %1086 = vmatpush1.bf16.msra.mxu0 %v473
    %1087 = vmatprep.subr.bf16.mxu0 %v478
    %1088 = vmatpush1.bf16.msra.mxu0 %v477
    %1089 = vmatprep.subr.bf16.mxu0 %v482
    %1090 = vmatpush1.bf16.msra.mxu0 %v481
    %1091 = vmatprep.subr.bf16.mxu0 %v486
    %1092 = vmatpush1.bf16.msra.mxu0 %v485
    %1093 = vmatprep.subr.bf16.mxu0 %v490
    %1094 = vmatpush1.bf16.msra.mxu0 %v489
    %1095 = vmatprep.subr.bf16.mxu0 %v494
    %1096 = vmatpush1.bf16.msra.mxu0 %v493
    %1097 = vmatprep.subr.bf16.mxu0 %v498
    %1098 = vmatpush1.bf16.msra.mxu0 %v497
    %1099 = vmatprep.subr.bf16.mxu0 0
    %1100 = vmatpush1.bf16.msra.mxu0 0
    %1101 = vmatprep.subr.bf16.mxu0 0
    %1102 = vmatpush1.bf16.msra.mxu0 0
    %1103 = vmatprep.subr.bf16.mxu0 0
    %1104 = vmatpush1.bf16.msra.mxu0 0
    %1105 = vmatprep.subr.bf16.mxu0 0
    %1106 = vmatpush1.bf16.msra.mxu0 0
    %1107 = vmatprep.subr.bf16.mxu0 0
    %1108 = vmatpush1.bf16.msra.mxu0 0
    %1109 = vmatprep.subr.bf16.mxu0 0
    %1110 = vmatpush1.bf16.msra.mxu0 0
    %1111 = vmatprep.subr.bf16.mxu0 0
    %1112 = vmatpush1.bf16.msra.mxu0 0
    %1113 = vmatprep.subr.bf16.mxu0 0
    %1114 = vmatpush1.bf16.msra.mxu0 0
    %1115 = vmatprep.mubr.bf16.mxu0 0
    %1116 = vmatmul.mubr.bf16.gmra.mrb[0].mxu0 %v1041
    %v1117 = vpop.f32.mrb[0].mxu0
    %v1118 = vadd.f32 0.0, %v1117
    %v1119 = vpop.f32.mrb[0].mxu0
    %v1120 = vadd.f32 0.0, %v1119
    %v1121 = vpop.f32.mrb[0].mxu0
    %v1122 = vpop.f32.mrb[0].mxu0
    %1123 = vdwg.mxu0
    %v1124 = vadd.f32 %v1037, %v1077
    %v1125 = vadd.f32 %v1038, %v1079
    %v1126 = vadd.f32 %v1039, %v1118
    %v1127 = vadd.f32 %v1040, %v1120
    %v1128 = vxor.u32 %v1124, 2147483648
    %v1129 = vmul.f32 %v1128, 1.442695
    %v1130 = vpow.pop %v1129
    %v1131 = vadd.f32 %v1130, 1.0
    %v1132 = vrcp.pop %v1131
    %v1133 = vmul.f32 1.0, %v1132
    %v1134 = vxor.u32 %v1125, 2147483648
    %v1135 = vmul.f32 %v1134, 1.442695
    %v1136 = vpow.pop %v1135
    %v1137 = vadd.f32 %v1136, 1.0
    %v1138 = vrcp.pop %v1137
    %v1139 = vmul.f32 1.0, %v1138
    %v1140 = vtanh.pop %v1126
    %v1141 = vxor.u32 %v1127, 2147483648
    %v1142 = vmul.f32 %v1141, 1.442695
    %v1143 = vpow.pop %v1142
    %v1144 = vadd.f32 %v1143, 1.0
    %v1145 = vrcp.pop %v1144
    %v1146 = vmul.f32 1.0, %v1145
    %v1147 = vmul.f32 %v1139, %v1033
    %v1148 = vmul.f32 %v1133, %v1140
    %v1149 = vadd.f32 %v1147, %v1148
    %v1150 = vtanh.pop %v1149
    %v1151 = vmul.f32 %v1146, %v1150
    %s1152 = sadd.s32 %s328, 4
    %v1153 = vstv %s1152
    %vm1154 = vcmp.lt.s32.totalorder %v1153, %v327
    %v1155 = vsel %vm1154, 1, 0
    %1156 = vset.pattern.permute.xlu0 0
    %1157 = vperm.xlu0 %1156, %v1155
    %v1158 = vpop.permute.xlu0 %1157
    %vm1159 = vcmp.eq.s32.totalorder %v1158, 1
    %v1160 = vsel %vm1159, %v1151, %v1032
    %v1161 = vsel %vm1159, %v1149, %v1033
    %s1162 = smul.u32 5, 4
    %s1163 = smul.addr %s1162, 8
    %s1164 = scalar_lea.vmem [#allocation4], %s1163
    %v1165 = vld [vmem:[%s1164] sm:$0xff]
    %v1166 = vld [vmem:[%s1164 + $0x8] sm:$0xff]
    %v1167 = vld [vmem:[%s1164 + $0x10] sm:$0xff]
    %v1168 = vld [vmem:[%s1164 + $0x18] sm:$0xff]
    %v1169 = vpack.c.bf16 %v1160, %v1160
    %1170 = vmatprep.subr.bf16.mxu0 %v468
    %1171 = vmatpush1.bf16.msra.mxu0 %v467
    %1172 = vmatprep.subr.bf16.mxu0 %v472
    %1173 = vmatpush1.bf16.msra.mxu0 %v471
    %1174 = vmatprep.subr.bf16.mxu0 %v476
    %1175 = vmatpush1.bf16.msra.mxu0 %v475
    %1176 = vmatprep.subr.bf16.mxu0 %v480
    %1177 = vmatpush1.bf16.msra.mxu0 %v479
    %1178 = vmatprep.subr.bf16.mxu0 %v484
    %1179 = vmatpush1.bf16.msra.mxu0 %v483
    %1180 = vmatprep.subr.bf16.mxu0 %v488
    %1181 = vmatpush1.bf16.msra.mxu0 %v487
    %1182 = vmatprep.subr.bf16.mxu0 %v492
    %1183 = vmatpush1.bf16.msra.mxu0 %v491
    %1184 = vmatprep.subr.bf16.mxu0 %v496
    %1185 = vmatpush1.bf16.msra.mxu0 %v495
    %1186 = vmatprep.subr.bf16.mxu0 0
    %1187 = vmatpush1.bf16.msra.mxu0 0
    %1188 = vmatprep.subr.bf16.mxu0 0
    %1189 = vmatpush1.bf16.msra.mxu0 0
    %1190 = vmatprep.subr.bf16.mxu0 0
    %1191 = vmatpush1.bf16.msra.mxu0 0
    %1192 = vmatprep.subr.bf16.mxu0 0
    %1193 = vmatpush1.bf16.msra.mxu0 0
    %1194 = vmatprep.subr.bf16.mxu0 0
    %1195 = vmatpush1.bf16.msra.mxu0 0
    %1196 = vmatprep.subr.bf16.mxu0 0
    %1197 = vmatpush1.bf16.msra.mxu0 0
    %1198 = vmatprep.subr.bf16.mxu0 0
    %1199 = vmatpush1.bf16.msra.mxu0 0
    %1200 = vmatprep.subr.bf16.mxu0 0
    %1201 = vmatpush1.bf16.msra.mxu0 0
    %1202 = vmatprep.mubr.bf16.mxu0 0
    %1203 = vmatmul.mubr.bf16.gmra.mrb[0].mxu0 %v1169
    %v1204 = vpop.f32.mrb[0].mxu0
    %v1205 = vadd.f32 0.0, %v1204
    %v1206 = vpop.f32.mrb[0].mxu0
    %v1207 = vadd.f32 0.0, %v1206
    %v1208 = vpop.f32.mrb[0].mxu0
    %v1209 = vpop.f32.mrb[0].mxu0
    %1210 = vdwg.mxu0
    %1211 = vmatprep.subr.bf16.mxu0 %v470
    %1212 = vmatpush1.bf16.msra.mxu0 %v469
    %1213 = vmatprep.subr.bf16.mxu0 %v474
    %1214 = vmatpush1.bf16.msra.mxu0 %v473
    %1215 = vmatprep.subr.bf16.mxu0 %v478
    %1216 = vmatpush1.bf16.msra.mxu0 %v477
    %1217 = vmatprep.subr.bf16.mxu0 %v482
    %1218 = vmatpush1.bf16.msra.mxu0 %v481
    %1219 = vmatprep.subr.bf16.mxu0 %v486
    %1220 = vmatpush1.bf16.msra.mxu0 %v485
    %1221 = vmatprep.subr.bf16.mxu0 %v490
    %1222 = vmatpush1.bf16.msra.mxu0 %v489
    %1223 = vmatprep.subr.bf16.mxu0 %v494
    %1224 = vmatpush1.bf16.msra.mxu0 %v493
    %1225 = vmatprep.subr.bf16.mxu0 %v498
    %1226 = vmatpush1.bf16.msra.mxu0 %v497
    %1227 = vmatprep.subr.bf16.mxu0 0
    %1228 = vmatpush1.bf16.msra.mxu0 0
    %1229 = vmatprep.subr.bf16.mxu0 0
    %1230 = vmatpush1.bf16.msra.mxu0 0
    %1231 = vmatprep.subr.bf16.mxu0 0
    %1232 = vmatpush1.bf16.msra.mxu0 0
    %1233 = vmatprep.subr.bf16.mxu0 0
    %1234 = vmatpush1.bf16.msra.mxu0 0
    %1235 = vmatprep.subr.bf16.mxu0 0
    %1236 = vmatpush1.bf16.msra.mxu0 0
    %1237 = vmatprep.subr.bf16.mxu0 0
    %1238 = vmatpush1.bf16.msra.mxu0 0
    %1239 = vmatprep.subr.bf16.mxu0 0
    %1240 = vmatpush1.bf16.msra.mxu0 0
    %1241 = vmatprep.subr.bf16.mxu0 0
    %1242 = vmatpush1.bf16.msra.mxu0 0
    %1243 = vmatprep.mubr.bf16.mxu0 0
    %1244 = vmatmul.mubr.bf16.gmra.mrb[0].mxu0 %v1169
    %v1245 = vpop.f32.mrb[0].mxu0
    %v1246 = vadd.f32 0.0, %v1245
    %v1247 = vpop.f32.mrb[0].mxu0
    %v1248 = vadd.f32 0.0, %v1247
    %v1249 = vpop.f32.mrb[0].mxu0
    %v1250 = vpop.f32.mrb[0].mxu0
    %1251 = vdwg.mxu0
    %v1252 = vadd.f32 %v1165, %v1205
    %v1253 = vadd.f32 %v1166, %v1207
    %v1254 = vadd.f32 %v1167, %v1246
    %v1255 = vadd.f32 %v1168, %v1248
    %v1256 = vxor.u32 %v1252, 2147483648
    %v1257 = vmul.f32 %v1256, 1.442695
    %v1258 = vpow.pop %v1257
    %v1259 = vadd.f32 %v1258, 1.0
    %v1260 = vrcp.pop %v1259
    %v1261 = vmul.f32 1.0, %v1260
    %v1262 = vxor.u32 %v1253, 2147483648
    %v1263 = vmul.f32 %v1262, 1.442695
    %v1264 = vpow.pop %v1263
    %v1265 = vadd.f32 %v1264, 1.0
    %v1266 = vrcp.pop %v1265
    %v1267 = vmul.f32 1.0, %v1266
    %v1268 = vtanh.pop %v1254
    %v1269 = vxor.u32 %v1255, 2147483648
    %v1270 = vmul.f32 %v1269, 1.442695
    %v1271 = vpow.pop %v1270
    %v1272 = vadd.f32 %v1271, 1.0
    %v1273 = vrcp.pop %v1272
    %v1274 = vmul.f32 1.0, %v1273
    %v1275 = vmul.f32 %v1267, %v1161
    %v1276 = vmul.f32 %v1261, %v1268
    %v1277 = vadd.f32 %v1275, %v1276
    %v1278 = vtanh.pop %v1277
    %v1279 = vmul.f32 %v1274, %v1278
    %s1280 = sadd.s32 %s328, 5
    %v1281 = vstv %s1280
    %vm1282 = vcmp.lt.s32.totalorder %v1281, %v327
    %v1283 = vsel %vm1282, 1, 0
    %1284 = vset.pattern.permute.xlu0 0
    %1285 = vperm.xlu0 %1284, %v1283
    %v1286 = vpop.permute.xlu0 %1285
    %vm1287 = vcmp.eq.s32.totalorder %v1286, 1
    %v1288 = vsel %vm1287, %v1279, %v1160
    %v1289 = vsel %vm1287, %v1277, %v1161
    %s1290 = smul.u32 6, 4
    %s1291 = smul.addr %s1290, 8
    %s1292 = scalar_lea.vmem [#allocation4], %s1291
    %v1293 = vld [vmem:[%s1292] sm:$0xff]
    %v1294 = vld [vmem:[%s1292 + $0x8] sm:$0xff]
    %v1295 = vld [vmem:[%s1292 + $0x10] sm:$0xff]
    %v1296 = vld [vmem:[%s1292 + $0x18] sm:$0xff]
    %v1297 = vpack.c.bf16 %v1288, %v1288
    %1298 = vmatprep.subr.bf16.mxu0 %v468
    %1299 = vmatpush1.bf16.msra.mxu0 %v467
    %1300 = vmatprep.subr.bf16.mxu0 %v472
    %1301 = vmatpush1.bf16.msra.mxu0 %v471
    %1302 = vmatprep.subr.bf16.mxu0 %v476
    %1303 = vmatpush1.bf16.msra.mxu0 %v475
    %1304 = vmatprep.subr.bf16.mxu0 %v480
    %1305 = vmatpush1.bf16.msra.mxu0 %v479
    %1306 = vmatprep.subr.bf16.mxu0 %v484
    %1307 = vmatpush1.bf16.msra.mxu0 %v483
    %1308 = vmatprep.subr.bf16.mxu0 %v488
    %1309 = vmatpush1.bf16.msra.mxu0 %v487
    %1310 = vmatprep.subr.bf16.mxu0 %v492
    %1311 = vmatpush1.bf16.msra.mxu0 %v491
    %1312 = vmatprep.subr.bf16.mxu0 %v496
    %1313 = vmatpush1.bf16.msra.mxu0 %v495
    %1314 = vmatprep.subr.bf16.mxu0 0
    %1315 = vmatpush1.bf16.msra.mxu0 0
    %1316 = vmatprep.subr.bf16.mxu0 0
    %1317 = vmatpush1.bf16.msra.mxu0 0
    %1318 = vmatprep.subr.bf16.mxu0 0
    %1319 = vmatpush1.bf16.msra.mxu0 0
    %1320 = vmatprep.subr.bf16.mxu0 0
    %1321 = vmatpush1.bf16.msra.mxu0 0
    %1322 = vmatprep.subr.bf16.mxu0 0
    %1323 = vmatpush1.bf16.msra.mxu0 0
    %1324 = vmatprep.subr.bf16.mxu0 0
    %1325 = vmatpush1.bf16.msra.mxu0 0
    %1326 = vmatprep.subr.bf16.mxu0 0
    %1327 = vmatpush1.bf16.msra.mxu0 0
    %1328 = vmatprep.subr.bf16.mxu0 0
    %1329 = vmatpush1.bf16.msra.mxu0 0
    %1330 = vmatprep.mubr.bf16.mxu0 0
    %1331 = vmatmul.mubr.bf16.gmra.mrb[0].mxu0 %v1297
    %v1332 = vpop.f32.mrb[0].mxu0
    %v1333 = vadd.f32 0.0, %v1332
    %v1334 = vpop.f32.mrb[0].mxu0
    %v1335 = vadd.f32 0.0, %v1334
    %v1336 = vpop.f32.mrb[0].mxu0
    %v1337 = vpop.f32.mrb[0].mxu0
    %1338 = vdwg.mxu0
    %1339 = vmatprep.subr.bf16.mxu0 %v470
    %1340 = vmatpush1.bf16.msra.mxu0 %v469
    %1341 = vmatprep.subr.bf16.mxu0 %v474
    %1342 = vmatpush1.bf16.msra.mxu0 %v473
    %1343 = vmatprep.subr.bf16.mxu0 %v478
    %1344 = vmatpush1.bf16.msra.mxu0 %v477
    %1345 = vmatprep.subr.bf16.mxu0 %v482
    %1346 = vmatpush1.bf16.msra.mxu0 %v481
    %1347 = vmatprep.subr.bf16.mxu0 %v486
    %1348 = vmatpush1.bf16.msra.mxu0 %v485
    %1349 = vmatprep.subr.bf16.mxu0 %v490
    %1350 = vmatpush1.bf16.msra.mxu0 %v489
    %1351 = vmatprep.subr.bf16.mxu0 %v494
    %1352 = vmatpush1.bf16.msra.mxu0 %v493
    %1353 = vmatprep.subr.bf16.mxu0 %v498
    %1354 = vmatpush1.bf16.msra.mxu0 %v497
    %1355 = vmatprep.subr.bf16.mxu0 0
    %1356 = vmatpush1.bf16.msra.mxu0 0
    %1357 = vmatprep.subr.bf16.mxu0 0
    %1358 = vmatpush1.bf16.msra.mxu0 0
    %1359 = vmatprep.subr.bf16.mxu0 0
    %1360 = vmatpush1.bf16.msra.mxu0 0
    %1361 = vmatprep.subr.bf16.mxu0 0
    %1362 = vmatpush1.bf16.msra.mxu0 0
    %1363 = vmatprep.subr.bf16.mxu0 0
    %1364 = vmatpush1.bf16.msra.mxu0 0
    %1365 = vmatprep.subr.bf16.mxu0 0
    %1366 = vmatpush1.bf16.msra.mxu0 0
    %1367 = vmatprep.subr.bf16.mxu0 0
    %1368 = vmatpush1.bf16.msra.mxu0 0
    %1369 = vmatprep.subr.bf16.mxu0 0
    %1370 = vmatpush1.bf16.msra.mxu0 0
    %1371 = vmatprep.mubr.bf16.mxu0 0
    %1372 = vmatmul.mubr.bf16.gmra.mrb[0].mxu0 %v1297
    %v1373 = vpop.f32.mrb[0].mxu0
    %v1374 = vadd.f32 0.0, %v1373
    %v1375 = vpop.f32.mrb[0].mxu0
    %v1376 = vadd.f32 0.0, %v1375
    %v1377 = vpop.f32.mrb[0].mxu0
    %v1378 = vpop.f32.mrb[0].mxu0
    %1379 = vdwg.mxu0
    %v1380 = vadd.f32 %v1293, %v1333
    %v1381 = vadd.f32 %v1294, %v1335
    %v1382 = vadd.f32 %v1295, %v1374
    %v1383 = vadd.f32 %v1296, %v1376
    %v1384 = vxor.u32 %v1380, 2147483648
    %v1385 = vmul.f32 %v1384, 1.442695
    %v1386 = vpow.pop %v1385
    %v1387 = vadd.f32 %v1386, 1.0
    %v1388 = vrcp.pop %v1387
    %v1389 = vmul.f32 1.0, %v1388
    %v1390 = vxor.u32 %v1381, 2147483648
    %v1391 = vmul.f32 %v1390, 1.442695
    %v1392 = vpow.pop %v1391
    %v1393 = vadd.f32 %v1392, 1.0
    %v1394 = vrcp.pop %v1393
    %v1395 = vmul.f32 1.0, %v1394
    %v1396 = vtanh.pop %v1382
    %v1397 = vxor.u32 %v1383, 2147483648
    %v1398 = vmul.f32 %v1397, 1.442695
    %v1399 = vpow.pop %v1398
    %v1400 = vadd.f32 %v1399, 1.0
    %v1401 = vrcp.pop %v1400
    %v1402 = vmul.f32 1.0, %v1401
    %v1403 = vmul.f32 %v1395, %v1289
    %v1404 = vmul.f32 %v1389, %v1396
    %v1405 = vadd.f32 %v1403, %v1404
    %v1406 = vtanh.pop %v1405
    %v1407 = vmul.f32 %v1402, %v1406
    %s1408 = sadd.s32 %s328, 6
    %v1409 = vstv %s1408
    %vm1410 = vcmp.lt.s32.totalorder %v1409, %v327
    %v1411 = vsel %vm1410, 1, 0
    %1412 = vset.pattern.permute.xlu0 0
    %1413 = vperm.xlu0 %1412, %v1411
    %v1414 = vpop.permute.xlu0 %1413
    %vm1415 = vcmp.eq.s32.totalorder %v1414, 1
    %v1416 = vsel %vm1415, %v1407, %v1288
    %v1417 = vsel %vm1415, %v1405, %v1289
    %s1418 = smul.u32 7, 4
    %s1419 = smul.addr %s1418, 8
    %s1420 = scalar_lea.vmem [#allocation4], %s1419
    %v1421 = vld [vmem:[%s1420] sm:$0xff]
    %v1422 = vld [vmem:[%s1420 + $0x8] sm:$0xff]
    %v1423 = vld [vmem:[%s1420 + $0x10] sm:$0xff]
    %v1424 = vld [vmem:[%s1420 + $0x18] sm:$0xff]
    %v1425 = vpack.c.bf16 %v1416, %v1416
    %1426 = vmatprep.subr.bf16.mxu0 %v468
    %1427 = vmatpush1.bf16.msra.mxu0 %v467
    %1428 = vmatprep.subr.bf16.mxu0 %v472
    %1429 = vmatpush1.bf16.msra.mxu0 %v471
    %1430 = vmatprep.subr.bf16.mxu0 %v476
    %1431 = vmatpush1.bf16.msra.mxu0 %v475
    %1432 = vmatprep.subr.bf16.mxu0 %v480
    %1433 = vmatpush1.bf16.msra.mxu0 %v479
    %1434 = vmatprep.subr.bf16.mxu0 %v484
    %1435 = vmatpush1.bf16.msra.mxu0 %v483
    %1436 = vmatprep.subr.bf16.mxu0 %v488
    %1437 = vmatpush1.bf16.msra.mxu0 %v487
    %1438 = vmatprep.subr.bf16.mxu0 %v492
    %1439 = vmatpush1.bf16.msra.mxu0 %v491
    %1440 = vmatprep.subr.bf16.mxu0 %v496
    %1441 = vmatpush1.bf16.msra.mxu0 %v495
    %1442 = vmatprep.subr.bf16.mxu0 0
    %1443 = vmatpush1.bf16.msra.mxu0 0
    %1444 = vmatprep.subr.bf16.mxu0 0
    %1445 = vmatpush1.bf16.msra.mxu0 0
    %1446 = vmatprep.subr.bf16.mxu0 0
    %1447 = vmatpush1.bf16.msra.mxu0 0
    %1448 = vmatprep.subr.bf16.mxu0 0
    %1449 = vmatpush1.bf16.msra.mxu0 0
    %1450 = vmatprep.subr.bf16.mxu0 0
    %1451 = vmatpush1.bf16.msra.mxu0 0
    %1452 = vmatprep.subr.bf16.mxu0 0
    %1453 = vmatpush1.bf16.msra.mxu0 0
    %1454 = vmatprep.subr.bf16.mxu0 0
    %1455 = vmatpush1.bf16.msra.mxu0 0
    %1456 = vmatprep.subr.bf16.mxu0 0
    %1457 = vmatpush1.bf16.msra.mxu0 0
    %1458 = vmatprep.mubr.bf16.mxu0 0
    %1459 = vmatmul.mubr.bf16.gmra.mrb[0].mxu0 %v1425
    %v1460 = vpop.f32.mrb[0].mxu0
    %v1461 = vadd.f32 0.0, %v1460
    %v1462 = vpop.f32.mrb[0].mxu0
    %v1463 = vadd.f32 0.0, %v1462
    %v1464 = vpop.f32.mrb[0].mxu0
    %v1465 = vpop.f32.mrb[0].mxu0
    %1466 = vdwg.mxu0
    %1467 = vmatprep.subr.bf16.mxu0 %v470
    %1468 = vmatpush1.bf16.msra.mxu0 %v469
    %1469 = vmatprep.subr.bf16.mxu0 %v474
    %1470 = vmatpush1.bf16.msra.mxu0 %v473
    %1471 = vmatprep.subr.bf16.mxu0 %v478
    %1472 = vmatpush1.bf16.msra.mxu0 %v477
    %1473 = vmatprep.subr.bf16.mxu0 %v482
    %1474 = vmatpush1.bf16.msra.mxu0 %v481
    %1475 = vmatprep.subr.bf16.mxu0 %v486
    %1476 = vmatpush1.bf16.msra.mxu0 %v485
    %1477 = vmatprep.subr.bf16.mxu0 %v490
    %1478 = vmatpush1.bf16.msra.mxu0 %v489
    %1479 = vmatprep.subr.bf16.mxu0 %v494
    %1480 = vmatpush1.bf16.msra.mxu0 %v493
    %1481 = vmatprep.subr.bf16.mxu0 %v498
    %1482 = vmatpush1.bf16.msra.mxu0 %v497
    %1483 = vmatprep.subr.bf16.mxu0 0
    %1484 = vmatpush1.bf16.msra.mxu0 0
    %1485 = vmatprep.subr.bf16.mxu0 0
    %1486 = vmatpush1.bf16.msra.mxu0 0
    %1487 = vmatprep.subr.bf16.mxu0 0
    %1488 = vmatpush1.bf16.msra.mxu0 0
    %1489 = vmatprep.subr.bf16.mxu0 0
    %1490 = vmatpush1.bf16.msra.mxu0 0
    %1491 = vmatprep.subr.bf16.mxu0 0
    %1492 = vmatpush1.bf16.msra.mxu0 0
    %1493 = vmatprep.subr.bf16.mxu0 0
    %1494 = vmatpush1.bf16.msra.mxu0 0
    %1495 = vmatprep.subr.bf16.mxu0 0
    %1496 = vmatpush1.bf16.msra.mxu0 0
    %1497 = vmatprep.subr.bf16.mxu0 0
    %1498 = vmatpush1.bf16.msra.mxu0 0
    %1499 = vmatprep.mubr.bf16.mxu0 0
    %1500 = vmatmul.mubr.bf16.gmra.mrb[0].mxu0 %v1425
    %v1501 = vpop.f32.mrb[0].mxu0
    %v1502 = vadd.f32 0.0, %v1501
    %v1503 = vpop.f32.mrb[0].mxu0
    %v1504 = vadd.f32 0.0, %v1503
    %v1505 = vpop.f32.mrb[0].mxu0
    %v1506 = vpop.f32.mrb[0].mxu0
    %1507 = vdwg.mxu0
    %v1508 = vadd.f32 %v1421, %v1461
    %v1509 = vadd.f32 %v1422, %v1463
    %v1510 = vadd.f32 %v1423, %v1502
    %v1511 = vadd.f32 %v1424, %v1504
    %v1512 = vxor.u32 %v1508, 2147483648
    %v1513 = vmul.f32 %v1512, 1.442695
    %v1514 = vpow.pop %v1513
    %v1515 = vadd.f32 %v1514, 1.0
    %v1516 = vrcp.pop %v1515
    %v1517 = vmul.f32 1.0, %v1516
    %v1518 = vxor.u32 %v1509, 2147483648
    %v1519 = vmul.f32 %v1518, 1.442695
    %v1520 = vpow.pop %v1519
    %v1521 = vadd.f32 %v1520, 1.0
    %v1522 = vrcp.pop %v1521
    %v1523 = vmul.f32 1.0, %v1522
    %v1524 = vtanh.pop %v1510
    %v1525 = vxor.u32 %v1511, 2147483648
    %v1526 = vmul.f32 %v1525, 1.442695
    %v1527 = vpow.pop %v1526
    %v1528 = vadd.f32 %v1527, 1.0
    %v1529 = vrcp.pop %v1528
    %v1530 = vmul.f32 1.0, %v1529
    %v1531 = vmul.f32 %v1523, %v1417
    %v1532 = vmul.f32 %v1517, %v1524
    %v1533 = vadd.f32 %v1531, %v1532
    %v1534 = vtanh.pop %v1533
    %v1535 = vmul.f32 %v1530, %v1534
    %s1536 = sadd.s32 %s328, 7
    %v1537 = vstv %s1536
    %vm1538 = vcmp.lt.s32.totalorder %v1537, %v327
    %v1539 = vsel %vm1538, 1, 0
    %1540 = vset.pattern.permute.xlu0 0
    %1541 = vperm.xlu0 %1540, %v1539
    %v1542 = vpop.permute.xlu0 %1541
    %vm1543 = vcmp.eq.s32.totalorder %v1542, 1
    %v1544 = vsel %vm1543, %v1535, %v1416
    %v1545 = vsel %vm1543, %v1533, %v1417
    %1546 = vst [vmem:[#allocation2] sm:$0xff] %v1544
    %1547 = vst [vmem:[#allocation3] sm:$0xff] %v1545
    // Predicated region
    $region42: #{tpu_custom_call.1} parent=1 // pred_check
      %p1548 = pneg %p56
    $region43: #{tpu_custom_call.1} parent=1 // pred_check_branch
      %1550 = sbr.rel (%p1548) target = $region45
    $region44: #{tpu_custom_call.1} parent=1 // pred_region
      %v1551 = vld [vmem:[#allocation2] sm:$0xff]
      %v1552 = vld [vmem:[#allocation8] sm:$0xff]
      %v1553 = vld [vmem:[#allocation8 + $0x8] sm:$0xff]
      %v1554 = vld [vmem:[#allocation8 + $0x10] sm:$0xff]
      %v1555 = vld [vmem:[#allocation8 + $0x18] sm:$0xff]
      %v1556 = vld [vmem:[#allocation8 + $0x20] sm:$0xff]
      %v1557 = vld [vmem:[#allocation8 + $0x28] sm:$0xff]
      %v1558 = vld [vmem:[#allocation8 + $0x30] sm:$0xff]
      %v1559 = vld [vmem:[#allocation8 + $0x38] sm:$0xff]
      %v1560 = vld [vmem:[#allocation8 + $0x40] sm:$0xff]
      %v1561 = vld [vmem:[#allocation8 + $0x48] sm:$0xff]
      %v1562 = vld [vmem:[#allocation8 + $0x50] sm:$0xff]
      %v1563 = vld [vmem:[#allocation8 + $0x58] sm:$0xff]
      %v1564 = vld [vmem:[#allocation8 + $0x60] sm:$0xff]
      %v1565 = vld [vmem:[#allocation8 + $0x68] sm:$0xff]
      %v1566 = vld [vmem:[#allocation8 + $0x70] sm:$0xff]
      %v1567 = vld [vmem:[#allocation8 + $0x78] sm:$0xff]
      %v1568 = vld [vmem:[%s6] sm:$0x1]
      %v1570 = vlaneseq
      %v1571 = vshrl.u32 %v1570, 7
      %v1572 = vsub.s32 0, %v1571
      %v1573 = vrot.slane %v1568, %v1572
      %1575 = vmatprep.subr.mxu0 0.0
      %1576 = vmatpush1.msra.mxu0 %v1552
      %1577 = vmatprep.subr.mxu0 0.0
      %1578 = vmatpush1.msra.mxu0 %v1553
      %1579 = vmatprep.subr.mxu0 0.0
      %1580 = vmatpush1.msra.mxu0 %v1554
      %1581 = vmatprep.subr.mxu0 0.0
      %1582 = vmatpush1.msra.mxu0 %v1555
      %1583 = vmatprep.subr.mxu0 0.0
      %1584 = vmatpush1.msra.mxu0 %v1556
      %1585 = vmatprep.subr.mxu0 0.0
      %1586 = vmatpush1.msra.mxu0 %v1557
      %1587 = vmatprep.subr.mxu0 0.0
      %1588 = vmatpush1.msra.mxu0 %v1558
      %1589 = vmatprep.subr.mxu0 0.0
      %1590 = vmatpush1.msra.mxu0 %v1559
      %1591 = vmatprep.subr.mxu0 0.0
      %1592 = vmatpush1.msra.mxu0 %v1560
      %1593 = vmatprep.subr.mxu0 0.0
      %1594 = vmatpush1.msra.mxu0 %v1561
      %1595 = vmatprep.subr.mxu0 0.0
      %1596 = vmatpush1.msra.mxu0 %v1562
      %1597 = vmatprep.subr.mxu0 0.0
      %1598 = vmatpush1.msra.mxu0 %v1563
      %1599 = vmatprep.subr.mxu0 0.0
      %1600 = vmatpush1.msra.mxu0 %v1564
      %1601 = vmatprep.subr.mxu0 0.0
      %1602 = vmatpush1.msra.mxu0 %v1565
      %1603 = vmatprep.subr.mxu0 0.0
      %1604 = vmatpush1.msra.mxu0 %v1566
      %1605 = vmatprep.subr.mxu0 0.0
      %1606 = vmatpush1.msra.mxu0 %v1567
      %1607 = vmatprep.subr.mxu0 0.0
      %1608 = vmatpush1.msra.mxu0 0.0
      %1609 = vmatprep.subr.mxu0 0.0
      %1610 = vmatpush1.msra.mxu0 0.0
      %1611 = vmatprep.subr.mxu0 0.0
      %1612 = vmatpush1.msra.mxu0 0.0
      %1613 = vmatprep.subr.mxu0 0.0
      %1614 = vmatpush1.msra.mxu0 0.0
      %1615 = vmatprep.subr.mxu0 0.0
      %1616 = vmatpush1.msra.mxu0 0.0
      %1617 = vmatprep.subr.mxu0 0.0
      %1618 = vmatpush1.msra.mxu0 0.0
      %1619 = vmatprep.subr.mxu0 0.0
      %1620 = vmatpush1.msra.mxu0 0.0
      %1621 = vmatprep.subr.mxu0 0.0
      %1622 = vmatpush1.msra.mxu0 0.0
      %1623 = vmatprep.subr.mxu0 0.0
      %1624 = vmatpush1.msra.mxu0 0.0
      %1625 = vmatprep.subr.mxu0 0.0
      %1626 = vmatpush1.msra.mxu0 0.0
      %1627 = vmatprep.subr.mxu0 0.0
      %1628 = vmatpush1.msra.mxu0 0.0
      %1629 = vmatprep.subr.mxu0 0.0
      %1630 = vmatpush1.msra.mxu0 0.0
      %1631 = vmatprep.subr.mxu0 0.0
      %1632 = vmatpush1.msra.mxu0 0.0
      %1633 = vmatprep.subr.mxu0 0.0
      %1634 = vmatpush1.msra.mxu0 0.0
      %1635 = vmatprep.subr.mxu0 0.0
      %1636 = vmatpush1.msra.mxu0 0.0
      %1637 = vmatprep.subr.mxu0 0.0
      %1638 = vmatpush1.msra.mxu0 0.0
      %1639 = vmatprep.mubr.f32.mxu0 0.0
      %1640 = vmatmul.mubr.f32.gmra.mrb[0].mxu0 %v1551
      %v1641 = vpop.f32.mrb[0].mxu0
      %v1642 = vadd.f32 %v1573, %v1641
      %v1643 = vpop.f32.mrb[0].mxu0
      %1644 = vdwg.mxu0
      %1645 = vst [vmem:[#allocation10] sm:$0xff] %v1642
    $region45: #{tpu_custom_call.1} parent=1 // pred_fallthru
      _
    // Predicated region
    $region46: #{tpu_custom_call.1} parent=1 // pred_check
      _
    $region47: #{tpu_custom_call.1} parent=1 // pred_check_branch
      %1647 = sbr.rel (0) target = $region49
    $region48: #{tpu_custom_call.1} parent=1 // pred_region
      %s1649 = ssub.s32 128, 128
      %1650 = vsyncadd [#allocation7], %s1649
      %s1652 = sshll.u32 [#allocation10], 4
      %s1653 = int_to_ptr.vmem [resolvable:$true] %s1652
      %1655 = dma.vmem_to_hbm [thread:$0]  %s1653, 128, %s7, [#allocation7]
    $region49: #{tpu_custom_call.1} parent=1 // pred_fallthru
      _
    // Predicated region
    $region50: #{tpu_custom_call.1} parent=1 // pred_check
      _
    $region51: #{tpu_custom_call.1} parent=1 // pred_check_branch
      %1657 = sbr.rel (0) target = $region53
    $region52: #{tpu_custom_call.1} parent=1 // pred_region
      %1658 = dma.done [#allocation7], 128
    $region53: #{tpu_custom_call.1} parent=1 // pred_fallthru
      _
    %1659 = vsyncpa [#allocation6], 1
    %1660 = vsyncpa [#allocation9], 1
    %1661 = vsyncpa [#allocation7], 1

</llo_original>
